<compile_context>
chip_gen: v5e
topology: v5e:2x2
jax: 0.10.0
libtpu: 0.0.40
codegen_flags: <defaults>
</compile_context>

<pallas_src>
import functools
import math

import jax
import jax.numpy as jnp
from jax.experimental import pallas as pl
from jax.experimental.pallas import tpu as pltpu


# ----------------------------------------------------------------------------
# Tile selection helpers
# ----------------------------------------------------------------------------
def _pick_tile(dim, target, align):
    """Largest `align`-aligned divisor of `dim` that is <= target, else full dim."""
    if dim <= target:
        return dim  # full extent (always legal per the (8,128) BlockSpec rule)
    t = (target // align) * align
    while t >= align:
        if dim % t == 0:
            return t
        t -= align
    # No aligned divisor <= target.  Fail loudly instead of silently using a
    # huge single tile that could blow VMEM (review correctness item 3).
    if dim > 4 * target:
        raise ValueError(
            f"Cannot tile dimension {dim} (target={target}, align={align}); "
            "pad the input to a tileable size.")
    return dim


# ----------------------------------------------------------------------------
# Tiled matmul kernel (separate-projection / cross-attention path)
# ----------------------------------------------------------------------------
def _matmul_kernel(x_ref, w_ref, o_ref, acc_ref):
    # x_ref: (tm, tk), w_ref: (tk, tn), o_ref: (tm, tn), acc_ref: (tm, tn) f32
    @pl.when(pl.program_id(2) == 0)
    def _():
        acc_ref[...] = jnp.zeros_like(acc_ref)

    # Operands stay in their input dtype (bf16 in production) -> bf16 MXU path,
    # f32 accumulation via preferred_element_type.
    acc_ref[...] += jnp.dot(
        x_ref[...], w_ref[...], preferred_element_type=jnp.float32
    )

    @pl.when(pl.program_id(2) == pl.num_programs(2) - 1)
    def _():
        o_ref[...] = acc_ref[...].astype(o_ref.dtype)


def pallas_linear(x, weight_t, *, tm_target=512, tn_target=512, tk_target=512):
    """x: [..., D_in], weight_t: [D_in, D_out] (pre-transposed). Returns [..., D_out]."""
    orig_shape = x.shape
    D_in = orig_shape[-1]
    M = math.prod(orig_shape[:-1])
    D_out = weight_t.shape[1]
    x2 = x.reshape(M, D_in)

    tm = _pick_tile(M, tm_target, 8)
    tn = _pick_tile(D_out, tn_target, 128)
    tk = _pick_tile(D_in, tk_target, 128)
    # v7x has 2 TensorCores: make sure the parallel axes expose >= 2 blocks.
    if (M // tm) * (D_out // tn) < 2 and tm % 16 == 0:
        tm //= 2
    assert M % tm == 0 and D_out % tn == 0 and D_in % tk == 0
    grid = (M // tm, D_out // tn, D_in // tk)

    itemsize = jnp.dtype(x.dtype).itemsize
    out = pl.pallas_call(
        _matmul_kernel,
        out_shape=jax.ShapeDtypeStruct((M, D_out), x.dtype),
        grid=grid,
        in_specs=[
            pl.BlockSpec((tm, tk), lambda i, j, k: (i, k)),
            pl.BlockSpec((tk, tn), lambda i, j, k: (k, j)),
        ],
        out_specs=pl.BlockSpec((tm, tn), lambda i, j, k: (i, j)),
        scratch_shapes=[pltpu.VMEM((tm, tn), jnp.float32)],
        compiler_params=pltpu.CompilerParams(
            dimension_semantics=("parallel", "parallel", "arbitrary")
        ),
        cost_estimate=pl.CostEstimate(
            flops=2 * M * D_out * D_in,
            transcendentals=0,
            # Includes re-read factors: x is re-read per output column tile,
            # the weight per output row tile.
            bytes_accessed=(M * D_in * (D_out // tn)
                            + D_in * D_out * (M // tm)
                            + M * D_out) * itemsize,
        ),
    )(x2, weight_t)
    return out.reshape(*orig_shape[:-1], D_out)


# ----------------------------------------------------------------------------
# Fused QKV projection kernel (self-attention fast path)
# ----------------------------------------------------------------------------
def _qkv_proj_kernel(x_ref, w_ref, o_ref, acc_ref):
    # x_ref: (tm, tk), w_ref: (3, tk, tn), o_ref: (3, tm, tn), acc_ref f32.
    @pl.when(pl.program_id(2) == 0)
    def _():
        acc_ref[...] = jnp.zeros_like(acc_ref)

    x = x_ref[...]
    for idx in range(3):  # static unroll; the x tile is shared across Q/K/V
        acc_ref[idx] += jnp.dot(x, w_ref[idx], preferred_element_type=jnp.float32)

    @pl.when(pl.program_id(2) == pl.num_programs(2) - 1)
    def _():
        o_ref[...] = acc_ref[...].astype(o_ref.dtype)


def pallas_qkv_proj(x, w_qkv_t, *, tm_target=512, tn_target=256, tk_target=512):
    """x: [B, S, D_in], w_qkv_t: [3, D_in, D_out] -> stacked [3, B, S, D_out]."""
    B, S, D_in = x.shape
    D_out = w_qkv_t.shape[2]
    M = B * S
    x2 = x.reshape(M, D_in)

    tm = _pick_tile(M, tm_target, 8)
    tn = _pick_tile(D_out, tn_target, 128)
    tk = _pick_tile(D_in, tk_target, 128)
    if (M // tm) * (D_out // tn) < 2 and tm % 16 == 0:
        tm //= 2
    assert M % tm == 0 and D_out % tn == 0 and D_in % tk == 0
    grid = (M // tm, D_out // tn, D_in // tk)

    itemsize = jnp.dtype(x.dtype).itemsize
    out = pl.pallas_call(
        _qkv_proj_kernel,
        out_shape=jax.ShapeDtypeStruct((3, M, D_out), x.dtype),
        grid=grid,
        in_specs=[
            pl.BlockSpec((tm, tk), lambda i, j, k: (i, k)),
            pl.BlockSpec((3, tk, tn), lambda i, j, k: (0, k, j)),
        ],
        out_specs=pl.BlockSpec((3, tm, tn), lambda i, j, k: (0, i, j)),
        scratch_shapes=[pltpu.VMEM((3, tm, tn), jnp.float32)],
        compiler_params=pltpu.CompilerParams(
            dimension_semantics=("parallel", "parallel", "arbitrary")
        ),
        cost_estimate=pl.CostEstimate(
            flops=2 * M * 3 * D_out * D_in,
            transcendentals=0,
            bytes_accessed=(M * D_in * (D_out // tn)        # x read once per j
                            + 3 * D_in * D_out * (M // tm)  # weights per i
                            + 3 * M * D_out) * itemsize,
        ),
    )(x2, w_qkv_t)
    return out.reshape(3, B, S, D_out)


# ----------------------------------------------------------------------------
# Flash-attention kernel: heads batched on the MXU, W_o fused in the epilogue
# ----------------------------------------------------------------------------
def _mha_kernel(q_ref, k_ref, v_ref, wo_ref, o_ref, m_sc, l_sc, acc_sc, *,
                num_heads):
    # q_ref: (1, 1, tq, D), k_ref/v_ref: (1, 1, tk, D) lane-dense DMA tiles.
    # wo_ref: (D, D) pre-transposed output projection (resident in VMEM).
    # o_ref: (1, tq, D).  Scratch (persistent across the Sk axis):
    #   m_sc/l_sc: (H, tq, 1) f32, acc_sc: (H, tq, d_k) f32.
    ki = pl.program_id(2)

    @pl.when(ki == 0)
    def _():
        m_sc[...] = jnp.full_like(m_sc, -jnp.inf)
        l_sc[...] = jnp.zeros_like(l_sc)
        acc_sc[...] = jnp.zeros_like(acc_sc)

    _, _, tq, D = q_ref.shape
    tk = k_ref.shape[2]
    H = num_heads
    d_k = D // H

    # Register-level head split of the lane-dense tiles; all heads go through
    # one batched dot_general (H is the batch dim) -> one MXU op per step
    # instead of H narrow per-head pushes.  1/sqrt(d_k) is folded into W_q.
    q = q_ref[0, 0].reshape(tq, H, d_k)
    k = k_ref[0, 0].reshape(tk, H, d_k)
    v = v_ref[0, 0].reshape(tk, H, d_k)

    s = jnp.einsum("qhd,khd->hqk", q, k,
                   preferred_element_type=jnp.float32)      # (H, tq, tk)

    m_prev = m_sc[...]                                       # (H, tq, 1)
    m_new = jnp.maximum(m_prev, jnp.max(s, axis=-1, keepdims=True))
    alpha = jnp.exp(m_prev - m_new)
    p = jnp.exp(s - m_new)                                   # (H, tq, tk) f32

    l_sc[...] = alpha * l_sc[...] + jnp.sum(p, axis=-1, keepdims=True)
    acc_sc[...] = alpha * acc_sc[...] + jnp.einsum(
        "hqk,khd->hqd", p.astype(v.dtype), v,
        preferred_element_type=jnp.float32)                  # (H, tq, d_k)
    m_sc[...] = m_new

    @pl.when(ki == pl.num_programs(2) - 1)
    def _():
        # Exact divide (the approx reciprocal was the correctness failure).
        attn = acc_sc[...] / l_sc[...]                       # (H, tq, d_k) f32
        # One transpose+reshape in the epilogue -> lane-dense (tq, D) tile.
        attn = jnp.transpose(attn, (1, 0, 2)).reshape(tq, D)
        # Fused output projection: no [B, Sq, D] HBM round trip.
        out = jnp.dot(attn.astype(wo_ref.dtype), wo_ref[...],
                      preferred_element_type=jnp.float32)
        o_ref[0] = out.astype(o_ref.dtype)


def pallas_mha(q4, k4, v4, wo_t, num_heads, qg, kg, vg, *,
               tq_target=256, tk_target=256):
    """q4/k4/v4: [G, B, S, D] stacks (may be the same fused [3,B,S,D] array).

    qg/kg/vg select the block index along the leading stack axis, so the
    fused-QKV output is consumed in place without slicing it in HBM.
    Per-generation tile sweeps: v5e tk=128 / tq>=256, v6e tq=tk=256,
    v7x re-derive under its 64 MiB VMEM (defaults here fit all of them).
    """
    _, B, Sq, D = q4.shape
    Sk = k4.shape[2]
    assert D % num_heads == 0
    d_k = D // num_heads

    tq = _pick_tile(Sq, tq_target, 8)
    tk = _pick_tile(Sk, tk_target, 8)
    # v7x: make sure the parallel axes (b, qi) expose >= 2 blocks.
    if B * (Sq // tq) < 2 and tq % 16 == 0:
        tq //= 2
    assert Sq % tq == 0 and Sk % tk == 0
    grid = (B, Sq // tq, Sk // tk)

    kernel = functools.partial(_mha_kernel, num_heads=num_heads)
    itemsize = jnp.dtype(q4.dtype).itemsize
    n_q_tiles = Sq // tq

    return pl.pallas_call(
        kernel,
        out_shape=jax.ShapeDtypeStruct((B, Sq, D), q4.dtype),
        grid=grid,
        in_specs=[
            pl.BlockSpec((1, 1, tq, D), lambda b, qi, ki: (qg, b, qi, 0)),
            pl.BlockSpec((1, 1, tk, D), lambda b, qi, ki: (kg, b, ki, 0)),
            pl.BlockSpec((1, 1, tk, D), lambda b, qi, ki: (vg, b, ki, 0)),
            pl.BlockSpec((D, D), lambda b, qi, ki: (0, 0)),   # W_o resident
        ],
        out_specs=pl.BlockSpec((1, tq, D), lambda b, qi, ki: (b, qi, 0)),
        scratch_shapes=[
            pltpu.VMEM((num_heads, tq, 1), jnp.float32),      # running max m
            pltpu.VMEM((num_heads, tq, 1), jnp.float32),      # running sum l
            pltpu.VMEM((num_heads, tq, d_k), jnp.float32),    # output accumulator
        ],
        compiler_params=pltpu.CompilerParams(
            dimension_semantics=("parallel", "parallel", "arbitrary")
        ),
        cost_estimate=pl.CostEstimate(
            flops=4 * B * Sq * Sk * D + 2 * B * Sq * D * D,
            transcendentals=B * num_heads * Sq * Sk,
            bytes_accessed=(B * Sq * D                     # Q
                            + 2 * B * Sk * D * n_q_tiles   # K/V re-read per q tile
                            + D * D                        # W_o
                            + B * Sq * D) * itemsize,      # output
        ),
    )(q4, k4, v4, wo_t)


# ----------------------------------------------------------------------------
# Parameter prep + full forward (matches PyTorch Attention.forward, mask=None,
# eval mode)
# ----------------------------------------------------------------------------
def prepare_params(params, num_heads, compute_dtype=jnp.bfloat16):
    """One-time host-side prep: transpose PyTorch [D_out, D_in] weights to
    [D_in, D_out], fold 1/sqrt(d_k) into W_q, stack a fused [3, D, D] QKV
    weight, and cast to the MXU compute dtype (bf16 in production)."""
    d_model = params["W_q"].shape[0]
    d_k = d_model // num_heads
    scale = 1.0 / math.sqrt(d_k)
    wq_t = jnp.asarray(params["W_q"], jnp.float32).T * scale
    wk_t = jnp.asarray(params["W_k"], jnp.float32).T
    wv_t = jnp.asarray(params["W_v"], jnp.float32).T
    wo_t = jnp.asarray(params["W_o"], jnp.float32).T
    return {
        "W_qkv": jnp.stack([wq_t, wk_t, wv_t], axis=0).astype(compute_dtype),
        "W_q": wq_t.astype(compute_dtype),
        "W_k": wk_t.astype(compute_dtype),
        "W_v": wv_t.astype(compute_dtype),
        "W_o": wo_t.astype(compute_dtype),
    }


def self_attention_forward(x, params_t, *, num_heads):
    """Self-attention fast path: fused QKV matmul + flash MHA with fused W_o."""
    qkv = pallas_qkv_proj(x, params_t["W_qkv"])              # [3, B, S, D]
    return pallas_mha(qkv, qkv, qkv, params_t["W_o"], num_heads, 0, 1, 2)


def attention_forward(q, k, v, params_t, *, num_heads):
    """General (cross-attention) path: separate projections, same MHA kernel."""
    query = pallas_linear(q, params_t["W_q"])[None]          # [1, B, Sq, D]
    key = pallas_linear(k, params_t["W_k"])[None]            # [1, B, Sk, D]
    value = pallas_linear(v, params_t["W_v"])[None]          # [1, B, Sk, D]
    return pallas_mha(query, key, value, params_t["W_o"], num_heads, 0, 0, 0)


# ----------------------------------------------------------------------------
# Reference (pure JAX) mirroring the kernel's precision pipeline
# ----------------------------------------------------------------------------
def attention_reference(q, k, v, params_t, num_heads, compute_dtype):
    """Same math as the PyTorch module, with compute_dtype operands, f32
    accumulation and compute_dtype intermediates (mirrors the kernel's
    quantization points; exact when compute_dtype == float32)."""
    f32 = jnp.float32
    B, Sq, D = q.shape
    Sk = k.shape[1]
    d_k = D // num_heads

    def mm(a, b):
        return jnp.dot(a.astype(compute_dtype), b.astype(compute_dtype),
                       preferred_element_type=f32)

    query = mm(q, params_t["W_q"]).astype(compute_dtype)     # scale folded in W_q
    key = mm(k, params_t["W_k"]).astype(compute_dtype)
    value = mm(v, params_t["W_v"]).astype(compute_dtype)

    query = query.reshape(B, Sq, num_heads, d_k).transpose(0, 2, 1, 3)
    key = key.reshape(B, Sk, num_heads, d_k).transpose(0, 2, 1, 3)
    value = value.reshape(B, Sk, num_heads, d_k).transpose(0, 2, 1, 3)

    s = jnp.einsum("bhqd,bhkd->bhqk", query, key, preferred_element_type=f32)
    p = jax.nn.softmax(s, axis=-1)
    attn = jnp.einsum("bhqk,bhkd->bhqd", p.astype(compute_dtype), value,
                      preferred_element_type=f32)
    attn = attn.transpose(0, 2, 1, 3).reshape(B, Sq, D).astype(compute_dtype)
    out = jnp.dot(attn, params_t["W_o"].astype(compute_dtype),
                  preferred_element_type=f32)
    return out.astype(compute_dtype)


# ----------------------------------------------------------------------------
# Main
# ----------------------------------------------------------------------------
if __name__ == "__main__":
    # Config: d_model=32, head_size (= number of heads)=4 -> d_k=8
    d_model = 32
    num_heads = 4
    batch = 2
    seq_q = 8
    seq_kv = 16

    key0 = jax.random.PRNGKey(0)
    keys = jax.random.split(key0, 7)

    # Xavier-normal-ish deterministic init (std = sqrt(2 / (fan_in + fan_out)))
    std = math.sqrt(2.0 / (d_model + d_model))
    params = {
        "W_q": jax.random.normal(keys[0], (d_model, d_model), jnp.float32) * std,
        "W_k": jax.random.normal(keys[1], (d_model, d_model), jnp.float32) * std,
        "W_v": jax.random.normal(keys[2], (d_model, d_model), jnp.float32) * std,
        "W_o": jax.random.normal(keys[3], (d_model, d_model), jnp.float32) * std,
    }

    x = jax.random.normal(keys[4], (batch, seq_q, d_model), jnp.float32)
    k_in = jax.random.normal(keys[5], (batch, seq_kv, d_model), jnp.float32)
    v_in = jax.random.normal(keys[6], (batch, seq_kv, d_model), jnp.float32)

    # ---- Test 1: fused self-attention path, bf16 MXU operands / f32 accum ----
    p_bf16 = prepare_params(params, num_heads, jnp.bfloat16)
    self_fwd = jax.jit(self_attention_forward, static_argnames=("num_heads",))
    out1 = self_fwd(x.astype(jnp.bfloat16), p_bf16, num_heads=num_heads)
    out1 = jax.block_until_ready(out1)
    ref1 = attention_reference(x, x, x, p_bf16, num_heads, jnp.bfloat16)
    assert out1.shape == (batch, seq_q, d_model)
    assert jnp.allclose(out1.astype(jnp.float32), ref1.astype(jnp.float32),
                        atol=3e-2, rtol=3e-2), "Self-attention (bf16) mismatch"

    # ---- Test 2: cross-attention path, f32 (exact reciprocal -> tight tol) ----
    p_f32 = prepare_params(params, num_heads, jnp.float32)
    cross_fwd = jax.jit(attention_forward, static_argnames=("num_heads",))
    out2 = cross_fwd(x, k_in, v_in, p_f32, num_heads=num_heads)
    out2 = jax.block_until_ready(out2)
    ref2 = attention_reference(x, k_in, v_in, p_f32, num_heads, jnp.float32)
    assert out2.shape == (batch, seq_q, d_model)
    assert jnp.allclose(out2, ref2, atol=2e-3, rtol=2e-3), \
        "Cross-attention (f32) mismatch"

    print("KERNEL_OK")
</pallas_src>

<mosaic_0001>
module attributes {stable_mosaic.version = 11 : i64} {
  func.func @_qkv_proj_kernel(%arg0: i32, %arg1: i32, %arg2: i32, %arg3: memref<8x32xbf16, #tpu.memory_space<vmem>>, %arg4: memref<3x32x32xbf16, #tpu.memory_space<vmem>>, %arg5: memref<3x8x32xbf16, #tpu.memory_space<vmem>>, %arg6: memref<3x8x32xf32, #tpu.memory_space<vmem>>) attributes {dimension_semantics = [#tpu.dimension_semantics<parallel>, #tpu.dimension_semantics<parallel>, #tpu.dimension_semantics<arbitrary>], iteration_bounds = array<i64: 2, 1, 1>, scalar_prefetch = 0 : i64, scratch_operands = 1 : i64, tpu.core_type = #tpu.core_type<tc>, window_params = [{transform_indices = @transform_0, window_bounds = array<i64: 8, 32>}, {transform_indices = @transform_1, window_bounds = array<i64: 3, 32, 32>}, {transform_indices = @transform_2, window_bounds = array<i64: 3, 8, 32>}]} {
    %c0_i32 = arith.constant 0 : i32
    %0 = arith.cmpi eq, %arg2, %c0_i32 : i32
    %1 = arith.extui %0 : i1 to i32
    %c0_i32_0 = arith.constant 0 : i32
    %2 = arith.cmpi ne, %1, %c0_i32_0 : i32
    scf.if %2 {
      %cst_31 = arith.constant 0.000000e+00 : f32
      %34 = vector.broadcast %cst_31 : f32 to vector<3x8x32xf32>
      %c0_32 = arith.constant 0 : index
      %c0_33 = arith.constant 0 : index
      %c0_34 = arith.constant 0 : index
      %35 = vector.load %arg6[%c0_32, %c0_33, %c0_34] : memref<3x8x32xf32, #tpu.memory_space<vmem>>, vector<3x8x32xf32>
      tpu.vector_store %arg6[%c0_32, %c0_33, %c0_34], %34 {strides = array<i32>} : memref<3x8x32xf32, #tpu.memory_space<vmem>>, vector<3x8x32xf32>,
    } else {
    }
    %c0 = arith.constant 0 : index
    %c0_1 = arith.constant 0 : index
    %3 = vector.load %arg3[%c0, %c0_1] : memref<8x32xbf16, #tpu.memory_space<vmem>>, vector<8x32xbf16>
    %c0_2 = arith.constant 0 : index
    %c0_3 = arith.constant 0 : index
    %c0_4 = arith.constant 0 : index
    %4 = vector.load %arg6[%c0_2, %c0_3, %c0_4] : memref<3x8x32xf32, #tpu.memory_space<vmem>>, vector<1x8x32xf32>
    %5 = vector.shape_cast %4 : vector<1x8x32xf32> to vector<8x32xf32>
    %c0_5 = arith.constant 0 : index
    %c0_6 = arith.constant 0 : index
    %c0_7 = arith.constant 0 : index
    %6 = vector.load %arg4[%c0_5, %c0_6, %c0_7] : memref<3x32x32xbf16, #tpu.memory_space<vmem>>, vector<1x32x32xbf16>
    %7 = vector.shape_cast %6 : vector<1x32x32xbf16> to vector<32x32xbf16>
    %cst = arith.constant dense<0.000000e+00> : vector<8x32xf32>
    %8 = tpu.matmul %3, %7, %cst {dimension_numbers = #tpu.dot_dimension_numbers<[1], [0], [0], [1], [0, 0, 1, 1], [], []>} : vector<8x32xbf16>, vector<32x32xbf16>, vector<8x32xf32> -> vector<8x32xf32>
    %9 = arith.addf %5, %8 : vector<8x32xf32>
    %c0_8 = arith.constant 0 : index
    %c0_9 = arith.constant 0 : index
    %c0_10 = arith.constant 0 : index
    %10 = vector.load %arg6[%c0_8, %c0_9, %c0_10] : memref<3x8x32xf32, #tpu.memory_space<vmem>>, vector<1x8x32xf32>
    %11 = vector.shape_cast %10 : vector<1x8x32xf32> to vector<8x32xf32>
    %12 = vector.shape_cast %9 : vector<8x32xf32> to vector<1x8x32xf32>
    tpu.vector_store %arg6[%c0_8, %c0_9, %c0_10], %12 {strides = array<i32>} : memref<3x8x32xf32, #tpu.memory_space<vmem>>, vector<1x8x32xf32>,
    %c1 = arith.constant 1 : index
    %c0_11 = arith.constant 0 : index
    %c0_12 = arith.constant 0 : index
    %13 = vector.load %arg6[%c1, %c0_11, %c0_12] : memref<3x8x32xf32, #tpu.memory_space<vmem>>, vector<1x8x32xf32>
    %14 = vector.shape_cast %13 : vector<1x8x32xf32> to vector<8x32xf32>
    %c1_13 = arith.constant 1 : index
    %c0_14 = arith.constant 0 : index
    %c0_15 = arith.constant 0 : index
    %15 = vector.load %arg4[%c1_13, %c0_14, %c0_15] : memref<3x32x32xbf16, #tpu.memory_space<vmem>>, vector<1x32x32xbf16>
    %16 = vector.shape_cast %15 : vector<1x32x32xbf16> to vector<32x32xbf16>
    %cst_16 = arith.constant dense<0.000000e+00> : vector<8x32xf32>
    %17 = tpu.matmul %3, %16, %cst_16 {dimension_numbers = #tpu.dot_dimension_numbers<[1], [0], [0], [1], [0, 0, 1, 1], [], []>} : vector<8x32xbf16>, vector<32x32xbf16>, vector<8x32xf32> -> vector<8x32xf32>
    %18 = arith.addf %14, %17 : vector<8x32xf32>
    %c1_17 = arith.constant 1 : index
    %c0_18 = arith.constant 0 : index
    %c0_19 = arith.constant 0 : index
    %19 = vector.load %arg6[%c1_17, %c0_18, %c0_19] : memref<3x8x32xf32, #tpu.memory_space<vmem>>, vector<1x8x32xf32>
    %20 = vector.shape_cast %19 : vector<1x8x32xf32> to vector<8x32xf32>
    %21 = vector.shape_cast %18 : vector<8x32xf32> to vector<1x8x32xf32>
    tpu.vector_store %arg6[%c1_17, %c0_18, %c0_19], %21 {strides = array<i32>} : memref<3x8x32xf32, #tpu.memory_space<vmem>>, vector<1x8x32xf32>,
    %c2 = arith.constant 2 : index
    %c0_20 = arith.constant 0 : index
    %c0_21 = arith.constant 0 : index
    %22 = vector.load %arg6[%c2, %c0_20, %c0_21] : memref<3x8x32xf32, #tpu.memory_space<vmem>>, vector<1x8x32xf32>
    %23 = vector.shape_cast %22 : vector<1x8x32xf32> to vector<8x32xf32>
    %c2_22 = arith.constant 2 : index
    %c0_23 = arith.constant 0 : index
    %c0_24 = arith.constant 0 : index
    %24 = vector.load %arg4[%c2_22, %c0_23, %c0_24] : memref<3x32x32xbf16, #tpu.memory_space<vmem>>, vector<1x32x32xbf16>
    %25 = vector.shape_cast %24 : vector<1x32x32xbf16> to vector<32x32xbf16>
    %cst_25 = arith.constant dense<0.000000e+00> : vector<8x32xf32>
    %26 = tpu.matmul %3, %25, %cst_25 {dimension_numbers = #tpu.dot_dimension_numbers<[1], [0], [0], [1], [0, 0, 1, 1], [], []>} : vector<8x32xbf16>, vector<32x32xbf16>, vector<8x32xf32> -> vector<8x32xf32>
    %27 = arith.addf %23, %26 : vector<8x32xf32>
    %c2_26 = arith.constant 2 : index
    %c0_27 = arith.constant 0 : index
    %c0_28 = arith.constant 0 : index
    %28 = vector.load %arg6[%c2_26, %c0_27, %c0_28] : memref<3x8x32xf32, #tpu.memory_space<vmem>>, vector<1x8x32xf32>
    %29 = vector.shape_cast %28 : vector<1x8x32xf32> to vector<8x32xf32>
    %30 = vector.shape_cast %27 : vector<8x32xf32> to vector<1x8x32xf32>
    tpu.vector_store %arg6[%c2_26, %c0_27, %c0_28], %30 {strides = array<i32>} : memref<3x8x32xf32, #tpu.memory_space<vmem>>, vector<1x8x32xf32>,
    %c0_i32_29 = arith.constant 0 : i32
    %31 = arith.cmpi eq, %arg2, %c0_i32_29 : i32
    %32 = arith.extui %31 : i1 to i32
    %c0_i32_30 = arith.constant 0 : i32
    %33 = arith.cmpi ne, %32, %c0_i32_30 : i32
    scf.if %33 {
      %c0_31 = arith.constant 0 : index
      %c0_32 = arith.constant 0 : index
      %c0_33 = arith.constant 0 : index
      %34 = vector.load %arg6[%c0_31, %c0_32, %c0_33] : memref<3x8x32xf32, #tpu.memory_space<vmem>>, vector<3x8x32xf32>
      %35 = arith.truncf %34 : vector<3x8x32xf32> to vector<3x8x32xbf16>
      %c0_34 = arith.constant 0 : index
      %c0_35 = arith.constant 0 : index
      %c0_36 = arith.constant 0 : index
      %36 = vector.load %arg5[%c0_34, %c0_35, %c0_36] : memref<3x8x32xbf16, #tpu.memory_space<vmem>>, vector<3x8x32xbf16>
      tpu.vector_store %arg5[%c0_34, %c0_35, %c0_36], %35 {strides = array<i32>} : memref<3x8x32xbf16, #tpu.memory_space<vmem>>, vector<3x8x32xbf16>,
    } else {
    }
    return
  }
  func.func @transform_0(%arg0: i32, %arg1: i32, %arg2: i32) -> (i32, i32) {
    %c0_i32 = arith.constant 0 : i32
    return %arg0, %arg2 : i32, i32
  }
  func.func @transform_1(%arg0: i32, %arg1: i32, %arg2: i32) -> (i32, i32, i32) {
    %c0_i32 = arith.constant 0 : i32
    %c0_i32_0 = arith.constant 0 : i32
    return %c0_i32, %arg2, %arg1 : i32, i32, i32
  }
  func.func @transform_2(%arg0: i32, %arg1: i32, %arg2: i32) -> (i32, i32, i32) {
    %c0_i32 = arith.constant 0 : i32
    %c0_i32_0 = arith.constant 0 : i32
    return %c0_i32, %arg0, %arg1 : i32, i32, i32
  }
}

module attributes {stable_mosaic.version = 11 : i64} {
  func.func @_mha_kernel(%arg0: i32, %arg1: i32, %arg2: i32, %arg3: memref<1x1x8x32xbf16, #tpu.memory_space<vmem>>, %arg4: memref<1x1x8x32xbf16, #tpu.memory_space<vmem>>, %arg5: memref<1x1x8x32xbf16, #tpu.memory_space<vmem>>, %arg6: memref<32x32xbf16, #tpu.memory_space<vmem>>, %arg7: memref<1x8x32xbf16, #tpu.memory_space<vmem>>, %arg8: memref<4x8x1xf32, #tpu.memory_space<vmem>>, %arg9: memref<4x8x1xf32, #tpu.memory_space<vmem>>, %arg10: memref<4x8x8xf32, #tpu.memory_space<vmem>>) attributes {dimension_semantics = [#tpu.dimension_semantics<parallel>, #tpu.dimension_semantics<parallel>, #tpu.dimension_semantics<arbitrary>], iteration_bounds = array<i64: 2, 1, 1>, scalar_prefetch = 0 : i64, scratch_operands = 3 : i64, tpu.core_type = #tpu.core_type<tc>, window_params = [{transform_indices = @transform_0, window_bounds = array<i64: 1, 1, 8, 32>}, {transform_indices = @transform_1, window_bounds = array<i64: 1, 1, 8, 32>}, {transform_indices = @transform_2, window_bounds = array<i64: 1, 1, 8, 32>}, {pipeline_mode = #tpu.pipeline_mode<synchronous>, transform_indices = @transform_3, window_bounds = array<i64: 32, 32>}, {transform_indices = @transform_4, window_bounds = array<i64: 1, 8, 32>}]} {
    %c0_i32 = arith.constant 0 : i32
    %0 = arith.cmpi eq, %arg2, %c0_i32 : i32
    %1 = arith.extui %0 : i1 to i32
    %c0_i32_0 = arith.constant 0 : i32
    %2 = arith.cmpi ne, %1, %c0_i32_0 : i32
    scf.if %2 {
      %cst_35 = arith.constant 0xFF800000 : f32
      %39 = vector.broadcast %cst_35 : f32 to vector<4x8x1xf32>
      %c0_36 = arith.constant 0 : index
      %c0_37 = arith.constant 0 : index
      %c0_38 = arith.constant 0 : index
      %40 = vector.load %arg8[%c0_36, %c0_37, %c0_38] : memref<4x8x1xf32, #tpu.memory_space<vmem>>, vector<4x8x1xf32>
      tpu.vector_store %arg8[%c0_36, %c0_37, %c0_38], %39 {strides = array<i32>} : memref<4x8x1xf32, #tpu.memory_space<vmem>>, vector<4x8x1xf32>,
      %cst_39 = arith.constant 0.000000e+00 : f32
      %41 = vector.broadcast %cst_39 : f32 to vector<4x8x1xf32>
      %c0_40 = arith.constant 0 : index
      %c0_41 = arith.constant 0 : index
      %c0_42 = arith.constant 0 : index
      %42 = vector.load %arg9[%c0_40, %c0_41, %c0_42] : memref<4x8x1xf32, #tpu.memory_space<vmem>>, vector<4x8x1xf32>
      tpu.vector_store %arg9[%c0_40, %c0_41, %c0_42], %41 {strides = array<i32>} : memref<4x8x1xf32, #tpu.memory_space<vmem>>, vector<4x8x1xf32>,
      %cst_43 = arith.constant 0.000000e+00 : f32
      %43 = vector.broadcast %cst_43 : f32 to vector<4x8x8xf32>
      %c0_44 = arith.constant 0 : index
      %c0_45 = arith.constant 0 : index
      %c0_46 = arith.constant 0 : index
      %44 = vector.load %arg10[%c0_44, %c0_45, %c0_46] : memref<4x8x8xf32, #tpu.memory_space<vmem>>, vector<4x8x8xf32>
      tpu.vector_store %arg10[%c0_44, %c0_45, %c0_46], %43 {strides = array<i32>} : memref<4x8x8xf32, #tpu.memory_space<vmem>>, vector<4x8x8xf32>,
    } else {
    }
    %c0 = arith.constant 0 : index
    %c0_1 = arith.constant 0 : index
    %c0_2 = arith.constant 0 : index
    %c0_3 = arith.constant 0 : index
    %3 = vector.load %arg3[%c0, %c0_1, %c0_2, %c0_3] : memref<1x1x8x32xbf16, #tpu.memory_space<vmem>>, vector<1x1x8x32xbf16>
    %4 = vector.shape_cast %3 : vector<1x1x8x32xbf16> to vector<8x32xbf16>
    %5 = vector.shape_cast %4 : vector<8x32xbf16> to vector<8x4x8xbf16>
    %c0_4 = arith.constant 0 : index
    %c0_5 = arith.constant 0 : index
    %c0_6 = arith.constant 0 : index
    %c0_7 = arith.constant 0 : index
    %6 = vector.load %arg4[%c0_4, %c0_5, %c0_6, %c0_7] : memref<1x1x8x32xbf16, #tpu.memory_space<vmem>>, vector<1x1x8x32xbf16>
    %7 = vector.shape_cast %6 : vector<1x1x8x32xbf16> to vector<8x32xbf16>
    %8 = vector.shape_cast %7 : vector<8x32xbf16> to vector<8x4x8xbf16>
    %c0_8 = arith.constant 0 : index
    %c0_9 = arith.constant 0 : index
    %c0_10 = arith.constant 0 : index
    %c0_11 = arith.constant 0 : index
    %9 = vector.load %arg5[%c0_8, %c0_9, %c0_10, %c0_11] : memref<1x1x8x32xbf16, #tpu.memory_space<vmem>>, vector<1x1x8x32xbf16>
    %10 = vector.shape_cast %9 : vector<1x1x8x32xbf16> to vector<8x32xbf16>
    %11 = vector.shape_cast %10 : vector<8x32xbf16> to vector<8x4x8xbf16>
    "tpu.trace_start"() <{level = 10 : i32, message = "qhd,khd->hqk"}> : () -> ()
    %cst = arith.constant dense<0.000000e+00> : vector<4x8x8xf32>
    %12 = tpu.matmul %5, %8, %cst {dimension_numbers = #tpu.dot_dimension_numbers<[2], [2], [0], [0], [0, 1, 0, 0, 1, 0], [1], [1]>} : vector<8x4x8xbf16>, vector<8x4x8xbf16>, vector<4x8x8xf32> -> vector<4x8x8xf32>
    "tpu.trace_stop"() : () -> ()
    %c0_12 = arith.constant 0 : index
    %c0_13 = arith.constant 0 : index
    %c0_14 = arith.constant 0 : index
    %13 = vector.load %arg8[%c0_12, %c0_13, %c0_14] : memref<4x8x1xf32, #tpu.memory_space<vmem>>, vector<4x8x1xf32>
    %cst_15 = arith.constant dense<0xFF800000> : vector<4x8xf32>
    %14 = vector.multi_reduction <maximumf>, %12, %cst_15 [2] : vector<4x8x8xf32> to vector<4x8xf32>
    %15 = vector.shape_cast %14 : vector<4x8xf32> to vector<4x8x1xf32>
    %16 = arith.maximumf %13, %15 : vector<4x8x1xf32>
    %17 = arith.subf %13, %16 : vector<4x8x1xf32>
    %18 = math.exp %17 : vector<4x8x1xf32>
    %19 = vector.broadcast %16 : vector<4x8x1xf32> to vector<4x8x8xf32>
    %20 = arith.subf %12, %19 : vector<4x8x8xf32>
    %21 = math.exp %20 : vector<4x8x8xf32>
    %c0_16 = arith.constant 0 : index
    %c0_17 = arith.constant 0 : index
    %c0_18 = arith.constant 0 : index
    %22 = vector.load %arg9[%c0_16, %c0_17, %c0_18] : memref<4x8x1xf32, #tpu.memory_space<vmem>>, vector<4x8x1xf32>
    %23 = arith.mulf %18, %22 : vector<4x8x1xf32>
    %cst_19 = arith.constant dense<0.000000e+00> : vector<4x8xf32>
    %24 = vector.multi_reduction <add>, %21, %cst_19 [2] : vector<4x8x8xf32> to vector<4x8xf32>
    %25 = vector.shape_cast %24 : vector<4x8xf32> to vector<4x8x1xf32>
    %26 = arith.addf %23, %25 : vector<4x8x1xf32>
    %c0_20 = arith.constant 0 : index
    %c0_21 = arith.constant 0 : index
    %c0_22 = arith.constant 0 : index
    %27 = vector.load %arg9[%c0_20, %c0_21, %c0_22] : memref<4x8x1xf32, #tpu.memory_space<vmem>>, vector<4x8x1xf32>
    tpu.vector_store %arg9[%c0_20, %c0_21, %c0_22], %26 {strides = array<i32>} : memref<4x8x1xf32, #tpu.memory_space<vmem>>, vector<4x8x1xf32>,
    %c0_23 = arith.constant 0 : index
    %c0_24 = arith.constant 0 : index
    %c0_25 = arith.constant 0 : index
    %28 = vector.load %arg10[%c0_23, %c0_24, %c0_25] : memref<4x8x8xf32, #tpu.memory_space<vmem>>, vector<4x8x8xf32>
    %29 = vector.broadcast %18 : vector<4x8x1xf32> to vector<4x8x8xf32>
    %30 = arith.mulf %29, %28 : vector<4x8x8xf32>
    %31 = arith.truncf %21 : vector<4x8x8xf32> to vector<4x8x8xbf16>
    "tpu.trace_start"() <{level = 10 : i32, message = "hqk,khd->hqd"}> : () -> ()
    %cst_26 = arith.constant dense<0.000000e+00> : vector<4x8x8xf32>
    %32 = tpu.matmul %31, %11, %cst_26 {dimension_numbers = #tpu.dot_dimension_numbers<[2], [0], [1], [2], [0, 0, 0, 1, 1, 2], [0], [1]>} : vector<4x8x8xbf16>, vector<8x4x8xbf16>, vector<4x8x8xf32> -> vector<4x8x8xf32>
    "tpu.trace_stop"() : () -> ()
    %33 = arith.addf %30, %32 : vector<4x8x8xf32>
    %c0_27 = arith.constant 0 : index
    %c0_28 = arith.constant 0 : index
    %c0_29 = arith.constant 0 : index
    %34 = vector.load %arg10[%c0_27, %c0_28, %c0_29] : memref<4x8x8xf32, #tpu.memory_space<vmem>>, vector<4x8x8xf32>
    tpu.vector_store %arg10[%c0_27, %c0_28, %c0_29], %33 {strides = array<i32>} : memref<4x8x8xf32, #tpu.memory_space<vmem>>, vector<4x8x8xf32>,
    %c0_30 = arith.constant 0 : index
    %c0_31 = arith.constant 0 : index
    %c0_32 = arith.constant 0 : index
    %35 = vector.load %arg8[%c0_30, %c0_31, %c0_32] : memref<4x8x1xf32, #tpu.memory_space<vmem>>, vector<4x8x1xf32>
    tpu.vector_store %arg8[%c0_30, %c0_31, %c0_32], %16 {strides = array<i32>} : memref<4x8x1xf32, #tpu.memory_space<vmem>>, vector<4x8x1xf32>,
    %c0_i32_33 = arith.constant 0 : i32
    %36 = arith.cmpi eq, %arg2, %c0_i32_33 : i32
    %37 = arith.extui %36 : i1 to i32
    %c0_i32_34 = arith.constant 0 : i32
    %38 = arith.cmpi ne, %37, %c0_i32_34 : i32
    scf.if %38 {
      %c0_35 = arith.constant 0 : index
      %c0_36 = arith.constant 0 : index
      %c0_37 = arith.constant 0 : index
      %39 = vector.load %arg10[%c0_35, %c0_36, %c0_37] : memref<4x8x8xf32, #tpu.memory_space<vmem>>, vector<4x8x8xf32>
      %c0_38 = arith.constant 0 : index
      %c0_39 = arith.constant 0 : index
      %c0_40 = arith.constant 0 : index
      %40 = vector.load %arg9[%c0_38, %c0_39, %c0_40] : memref<4x8x1xf32, #tpu.memory_space<vmem>>, vector<4x8x1xf32>
      %41 = vector.broadcast %40 : vector<4x8x1xf32> to vector<4x8x8xf32>
      %42 = arith.divf %39, %41 : vector<4x8x8xf32>
      %43 = tpu.transpose %42, [1, 0, 2] : vector<4x8x8xf32> -> vector<8x4x8xf32>
      %44 = vector.shape_cast %43 : vector<8x4x8xf32> to vector<8x32xf32>
      %45 = arith.truncf %44 : vector<8x32xf32> to vector<8x32xbf16>
      %c0_41 = arith.constant 0 : index
      %c0_42 = arith.constant 0 : index
      %46 = vector.load %arg6[%c0_41, %c0_42] : memref<32x32xbf16, #tpu.memory_space<vmem>>, vector<32x32xbf16>
      %cst_43 = arith.constant dense<0.000000e+00> : vector<8x32xf32>
      %47 = tpu.matmul %45, %46, %cst_43 {dimension_numbers = #tpu.dot_dimension_numbers<[1], [0], [0], [1], [0, 0, 1, 1], [], []>} : vector<8x32xbf16>, vector<32x32xbf16>, vector<8x32xf32> -> vector<8x32xf32>
      %48 = arith.truncf %47 : vector<8x32xf32> to vector<8x32xbf16>
      %c0_44 = arith.constant 0 : index
      %c0_45 = arith.constant 0 : index
      %c0_46 = arith.constant 0 : index
      %49 = vector.load %arg7[%c0_44, %c0_45, %c0_46] : memref<1x8x32xbf16, #tpu.memory_space<vmem>>, vector<1x8x32xbf16>
      %50 = vector.shape_cast %49 : vector<1x8x32xbf16> to vector<8x32xbf16>
      %51 = vector.shape_cast %48 : vector<8x32xbf16> to vector<1x8x32xbf16>
      tpu.vector_store %arg7[%c0_44, %c0_45, %c0_46], %51 {strides = array<i32>} : memref<1x8x32xbf16, #tpu.memory_space<vmem>>, vector<1x8x32xbf16>,
    } else {
    }
    return
  }
  func.func @transform_0(%arg0: i32, %arg1: i32, %arg2: i32) -> (i32, i32, i32, i32) {
    %c0_i32 = arith.constant 0 : i32
    %c0_i32_0 = arith.constant 0 : i32
    %c0_i32_1 = arith.constant 0 : i32
    return %c0_i32, %arg0, %arg1, %c0_i32_0 : i32, i32, i32, i32
  }
  func.func @transform_1(%arg0: i32, %arg1: i32, %arg2: i32) -> (i32, i32, i32, i32) {
    %c1_i32 = arith.constant 1 : i32
    %c0_i32 = arith.constant 0 : i32
    %c0_i32_0 = arith.constant 0 : i32
    return %c1_i32, %arg0, %arg2, %c0_i32 : i32, i32, i32, i32
  }
  func.func @transform_2(%arg0: i32, %arg1: i32, %arg2: i32) -> (i32, i32, i32, i32) {
    %c2_i32 = arith.constant 2 : i32
    %c0_i32 = arith.constant 0 : i32
    %c0_i32_0 = arith.constant 0 : i32
    return %c2_i32, %arg0, %arg2, %c0_i32 : i32, i32, i32, i32
  }
  func.func @transform_3(%arg0: i32, %arg1: i32, %arg2: i32) -> (i32, i32) {
    %c0_i32 = arith.constant 0 : i32
    %c0_i32_0 = arith.constant 0 : i32
    %c0_i32_1 = arith.constant 0 : i32
    return %c0_i32, %c0_i32_0 : i32, i32
  }
  func.func @transform_4(%arg0: i32, %arg1: i32, %arg2: i32) -> (i32, i32, i32) {
    %c0_i32 = arith.constant 0 : i32
    %c0_i32_0 = arith.constant 0 : i32
    return %arg0, %arg1, %c0_i32 : i32, i32, i32
  }
}

</mosaic_0001>

<llo_original>
// kernel: self_attention_forward.2
$region0: #{self_attention_forward.2}
  #allocation0 [shape = 'u32[]', space=smem, size = 0x4, offset = 0x4, fixed_abs, tag = 'smem constant byte address 0x4 - core index']
  #allocation1 [shape = 'u32[72,128]{1,0:T(1,128)}', space=vmem, size = 0x9000, scoped, tag = 'internal scratch']
  #allocation2 [shape = 'f32[3,8,32]{2,1,0:T(8,128)}', space=vmem, size = 0x3000, scoped, tag = 'scratch operand']
  %s0 = inlined_call_operand.hbm [shape: bf16[16,32], index: 0, kind: input, shape index: {}]
  %s1 = inlined_call_operand.hbm [shape: bf16[3,32,32], index: 1, kind: input, shape index: {}]
  %s2 = inlined_call_operand.vmem [shape: bf16[3,16,32], index: 2, kind: output, shape index: {}]
  %s3 = sld [smem:[#allocation0]]
  $region94: #{self_attention_forward.2} parent=0
    _
  %s5 = ssub.s32 1, %s3
  %s6 = scalar_select 0, %s5, %s3
  $region1: #{self_attention_forward.2} parent=0
    #allocation3 [shape = 'u8[4096]{0}', space=vmem, size = 0x1000, scoped, tag = 'input window, operand 0']
    #allocation4 [shape = 's32[2]{0}', space=sflag, size = 0x8, scoped, tag = 'scoped memory for self_attention_forward.2']
    #allocation5 [shape = 'u8[24576]{0}', space=vmem, size = 0x6000, scoped, tag = 'input window, operand 1, single buffered']
    #allocation6 [shape = 's32[1]{0}', space=sflag, size = 0x4, scoped, tag = 'scoped memory for self_attention_forward.2']
    #allocation7 [shape = 'u8[12288]{0}', space=vmem, size = 0x3000, scoped, tag = 'output window, operand 0']
    %7 = vsyncpa [#allocation4], 0
    %s8 = scalar_lea.sflag [#allocation4], 1
    %9 = vsyncpa %s8, 0
    %10 = vsyncpa [#allocation6], 0
    loop: start=0, step=1, limit=4
    $region2: #{self_attention_forward.2} parent=1 // loop_pre_header
      _
    $region3: #{self_attention_forward.2} parent=1 // loop_header
      %s12 = sphi 0, %s16
      %p13 = scmp.ge.s32.totalorder %s12, 4
      %s19 = sphi 0, %s38
      %s20 = sphi 0, %s34
      %s21 = sphi 0, %s30
      %s22 = sphi 0, %s19
      %s23 = sphi 0, %s20
      %s24 = sphi 0, %s21
      %s25 = sphi 0, %s22
      %s26 = sphi 0, %s23
      %s27 = sphi 0, %s24
      %s43 = sphi 0, %s45
      %s46 = sphi 0, %s43
      %s47 = sphi 0, %s46
      %s63 = sphi 0, %s47
      %s71 = sphi 0, %s73
      %s74 = sphi 0, %s71
      %s75 = sphi 0, %s74
      %s91 = sphi 0, %s75
      %s99 = sphi 0, %s101
      %s102 = sphi 0, %s99
      %s103 = sphi 0, %s102
      %s119 = sphi 0, %s103
    $region4: #{self_attention_forward.2} parent=1 // loop_header_branch
      %15 = sbr.rel (%p13) target = $region8
    $region5: #{self_attention_forward.2} parent=1 // loop_body
      %s17 = ssub.s32 %s12, 1
      %s18 = ssub.s32 %s12, 2
      %s28 = sadd.s32 1, %s21
      %p29 = scmp.ge.s32.totalorder %s28, 1
      %s30 = scalar_select %p29, 0, %s28
      %s31 = sadd.s32 1, %s20
      %s32 = scalar_select %p29, %s31, %s20
      %p33 = scmp.ge.s32.totalorder %s32, 1
      %s34 = scalar_select %p33, 0, %s32
      %s35 = sadd.s32 1, %s19
      %s36 = scalar_select %p33, %s35, %s19
      %p37 = scmp.ge.s32.totalorder %s36, 2
      %s38 = scalar_select %p37, 0, %s36
      %s39 = ssub.s32 %s19, %s38
      %s40 = ssub.s32 %s21, %s30
      %s41 = sor.u32 %s39, %s40
      %p42 = scmp.eq.s32.totalorder %s41, 0
      %s44 = sadd.s32 %s43, 1
      %s45 = scalar_select %p42, %s43, %s44
      %p48 = pneg %p42
      %p49 = scmp.eq.s32.totalorder %s12, 1
      %p50 = por %p48, %p49
      %p51 = scmp.ne.s32.totalorder %s43, %s46
      %p52 = scmp.eq.s32.totalorder %s12, 0
      %p53 = por %p51, %p52
      %p54 = scmp.ne.s32.totalorder %s43, %s46
      %p55 = scmp.eq.s32.totalorder %s17, 1
      %p56 = por %p54, %p55
      %p57 = scmp.ne.s32.totalorder %s46, %s47
      %p58 = scmp.eq.s32.totalorder %s17, 0
      %p59 = por %p57, %p58
      %p60 = scmp.ne.s32.totalorder %s46, %s47
      %p61 = scmp.eq.s32.totalorder %s18, 1
      %p62 = por %p60, %p61
      %p64 = scmp.ne.s32.totalorder %s47, %s63
      %p65 = scmp.eq.s32.totalorder %s18, 0
      %p66 = por %p64, %p65
      %s67 = ssub.s32 %s21, %s30
      %s68 = ssub.s32 %s20, %s34
      %s69 = sor.u32 %s67, %s68
      %p70 = scmp.eq.s32.totalorder %s69, 0
      %s72 = sadd.s32 %s71, 1
      %s73 = scalar_select %p70, %s71, %s72
      %p76 = pneg %p70
      %p77 = scmp.eq.s32.totalorder %s12, 1
      %p78 = por %p76, %p77
      %p79 = scmp.ne.s32.totalorder %s71, %s74
      %p80 = scmp.eq.s32.totalorder %s12, 0
      %p81 = por %p79, %p80
      %p82 = scmp.ne.s32.totalorder %s71, %s74
      %p83 = scmp.eq.s32.totalorder %s17, 1
      %p84 = por %p82, %p83
      %p85 = scmp.ne.s32.totalorder %s74, %s75
      %p86 = scmp.eq.s32.totalorder %s17, 0
      %p87 = por %p85, %p86
      %p88 = scmp.ne.s32.totalorder %s74, %s75
      %p89 = scmp.eq.s32.totalorder %s18, 1
      %p90 = por %p88, %p89
      %p92 = scmp.ne.s32.totalorder %s75, %s91
      %p93 = scmp.eq.s32.totalorder %s18, 0
      %p94 = por %p92, %p93
      %s95 = ssub.s32 %s19, %s38
      %s96 = ssub.s32 %s20, %s34
      %s97 = sor.u32 %s95, %s96
      %p98 = scmp.eq.s32.totalorder %s97, 0
      %s100 = sadd.s32 %s99, 1
      %s101 = scalar_select %p98, %s99, %s100
      %p104 = pneg %p98
      %p105 = scmp.eq.s32.totalorder %s12, 1
      %p106 = por %p104, %p105
      %p107 = scmp.ne.s32.totalorder %s99, %s102
      %p108 = scmp.eq.s32.totalorder %s12, 0
      %p109 = por %p107, %p108
      %p110 = scmp.ne.s32.totalorder %s99, %s102
      %p111 = scmp.eq.s32.totalorder %s17, 1
      %p112 = por %p110, %p111
      %p113 = scmp.ne.s32.totalorder %s102, %s103
      %p114 = scmp.eq.s32.totalorder %s17, 0
      %p115 = por %p113, %p114
      %p116 = scmp.ne.s32.totalorder %s102, %s103
      %p117 = scmp.eq.s32.totalorder %s18, 1
      %p118 = por %p116, %p117
      %p120 = scmp.ne.s32.totalorder %s103, %s119
      %p121 = scmp.eq.s32.totalorder %s18, 0
      %p122 = por %p120, %p121
      %p123 = scmp.le.s32.totalorder 1, %s12
      %p124 = scmp.lt.s32.totalorder %s12, 3
      %p125 = pnand %p123, %p124
      %p126 = pneg %p125
      // Predicated region
      $region9: #{self_attention_forward.2} parent=5 // pred_check
        _
      $region10: #{self_attention_forward.2} parent=5 // pred_check_branch
        %128 = sbr.rel (%p125) target = $region12
      $region11: #{self_attention_forward.2} parent=5 // pred_region
        %s129 = ssub.s32 %s12, 1
        // Predicated region
        $region13: #{self_attention_forward.2} parent=11 // pred_check
          %p130 = pneg %p87
        $region14: #{self_attention_forward.2} parent=11 // pred_check_branch
          %132 = sbr.rel (%p130) target = $region16
        $region15: #{self_attention_forward.2} parent=11 // pred_region
          %s133 = smul.u32 4, %s24
          %135 = vsyncadd [#allocation6], 0
          %s136 = sadd.s32 %s23, %s133
          %s137 = smul.addr %s136, 4
          %s138 = scalar_lea.hbm %s1, %s137
          %s139 = sshll.u32 %s138, 4
          %s140 = int_to_ptr.hbm [resolvable:$true] %s139
          %s141 = sshll.u32 [#allocation5], 4
          %s142 = int_to_ptr.vmem [resolvable:$true] %s141
          %147 = dma.hbm_to_vmem [thread:$0]  %s140, 768, %s142, [#allocation6], 64, 64, 4
        $region16: #{self_attention_forward.2} parent=11 // pred_fallthru
          _
      $region12: #{self_attention_forward.2} parent=5 // pred_fallthru
        _
      %p148 = scmp.lt.s32.totalorder %s12, 2
      // Predicated region
      $region17: #{self_attention_forward.2} parent=5 // pred_check
        %p149 = pneg %p148
      $region18: #{self_attention_forward.2} parent=5 // pred_check_branch
        %151 = sbr.rel (%p149) target = $region20
      $region19: #{self_attention_forward.2} parent=5 // pred_region
        // Predicated region
        $region21: #{self_attention_forward.2} parent=19 // pred_check
          %p152 = pneg %p53
        $region22: #{self_attention_forward.2} parent=19 // pred_check_branch
          %154 = sbr.rel (%p152) target = $region24
        $region23: #{self_attention_forward.2} parent=19 // pred_region
          %s155 = sand.u32 %s43, 1
          %s156 = scalar_lea.sflag [#allocation4], %s155
          %s157 = sand.u32 %s43, 1
          %s158 = smul.addr %s157, 4
          %s159 = scalar_lea.vmem [#allocation3], %s158
          %161 = vsyncadd %s156, 0
          %s162 = sadd.s32 %s21, %s19
          %s163 = smul.addr %s162, 4
          %s164 = scalar_lea.hbm %s0, %s163
          %s166 = sshll.u32 %s164, 4
          %s167 = int_to_ptr.hbm [resolvable:$true] %s166
          %s168 = sshll.u32 %s159, 4
          %s169 = int_to_ptr.vmem [resolvable:$true] %s168
          %171 = dma.hbm_to_vmem [thread:$0]  %s167, 64, %s169, %s156
        $region24: #{self_attention_forward.2} parent=19 // pred_fallthru
          _
      $region20: #{self_attention_forward.2} parent=5 // pred_fallthru
        _
      %p172 = scmp.le.s32.totalorder 1, %s12
      %p173 = scmp.lt.s32.totalorder %s12, 3
      %p174 = pnand %p172, %p173
      %p175 = pneg %p174
      // Predicated region
      $region25: #{self_attention_forward.2} parent=5 // pred_check
        _
      $region26: #{self_attention_forward.2} parent=5 // pred_check_branch
        %177 = sbr.rel (%p174) target = $region28
      $region27: #{self_attention_forward.2} parent=5 // pred_region
        %s178 = ssub.s32 %s12, 1
        %s179 = sand.u32 %s46, 1
        %s180 = scalar_lea.sflag [#allocation4], %s179
        %s181 = sand.u32 %s46, 1
        %s182 = smul.addr %s181, 4
        %s183 = scalar_lea.vmem [#allocation3], %s182
        // Predicated region
        $region29: #{self_attention_forward.2} parent=27 // pred_check
          %p184 = pneg %p59
        $region30: #{self_attention_forward.2} parent=27 // pred_check_branch
          %186 = sbr.rel (%p184) target = $region32
        $region31: #{self_attention_forward.2} parent=27 // pred_region
          %188 = dma.done %s180, 64
        $region32: #{self_attention_forward.2} parent=27 // pred_fallthru
          _
        // Predicated region
        $region33: #{self_attention_forward.2} parent=27 // pred_check
          %p189 = pneg %p87
        $region34: #{self_attention_forward.2} parent=27 // pred_check_branch
          %191 = sbr.rel (%p189) target = $region36
        $region35: #{self_attention_forward.2} parent=27 // pred_region
          %193 = dma.done [#allocation6], 768
        $region36: #{self_attention_forward.2} parent=27 // pred_fallthru
          _
        %s194 = sand.u32 %s46, 1
        %s195 = scalar_lea.sflag [#allocation4], %s194
        %s196 = sand.u32 %s46, 1
        %s197 = smul.addr %s196, 4
        %s198 = scalar_lea.vmem [#allocation3], %s197
        %p199 = pneg %p59
        %p200 = pneg %p56
        %p201 = pneg %p87
        %p202 = pneg %p84
        %p203 = pneg %p115
        %p204 = pneg %p112
        %s205 = sand.u32 %s102, 1
        %s206 = sand.u32 %s102, 1
        %s207 = smul.addr %s206, 12
        %s208 = scalar_lea.vmem [#allocation7], %s207
        %s209 = smul.u32 4, %s24
        %p211 = scmp.eq.s32.totalorder %s24, 0
        // Predicated region
        $region37: #{self_attention_forward.2} parent=27 // pred_check
          %p212 = pneg %p211
        $region38: #{self_attention_forward.2} parent=27 // pred_check_branch
          %214 = sbr.rel (%p212) target = $region40
        $region39: #{self_attention_forward.2} parent=27 // pred_region
          %vm215 = vcmask 261120
          %216 = vst.msk [vmem:[#allocation2] sm:$0xff] %vm215, 0.0
          %217 = vst.msk [vmem:[#allocation2 + $0x8] sm:$0xff] %vm215, 0.0
          %218 = vst.msk [vmem:[#allocation2 + $0x10] sm:$0xff] %vm215, 0.0
        $region40: #{self_attention_forward.2} parent=27 // pred_fallthru
          _
        %v219 = vld [vmem:[%s183] sm:$0xf]
        %v220 = vld [vmem:[#allocation2] sm:$0xff]
        %v221 = vld [vmem:[#allocation5] sm:$0xf]
        %v222 = vld [vmem:[#allocation5 + $0x4] sm:$0xf]
        %v223 = vld [vmem:[#allocation5 + $0x8] sm:$0xf]
        %v224 = vld [vmem:[#allocation5 + $0xc] sm:$0xf]
        %v229 = vunpack.c.l.b16 %v221
        %v230 = vunpack.c.l.b16 %v222
        %v231 = vunpack.c.l.b16 %v223
        %v232 = vunpack.c.l.b16 %v224
        %v233 = vpack.c.b16 %v230, %v229
        %v234 = vpack.c.b16 %v232, %v231
        %vm237 = vcmask 261120
        %v239 = vsel %vm237, %v219, 0
        %241 = vmatpush.bf16.msra.mxu0 0
        %242 = vmatpush.bf16.msra.mxu0 0
        %243 = vmatpush.bf16.msra.mxu0 0
        %244 = vmatpush.bf16.msra.mxu0 0
        %245 = vmatpush.bf16.msra.mxu0 0
        %246 = vmatpush.bf16.msra.mxu0 0
        %247 = vmatpush.bf16.msra.mxu0 %v234
        %248 = vmatpush.bf16.msra.mxu0 %v233
        %249 = vmatmul.bf16.gmra.mxu0 %v239
        %v250 = vpop.f32.mrf.mxu0
        %v251 = vadd.f32 0.0, %v250
        %v252 = vpop.f32.mrf.mxu0
        %253 = vdwg.mxu0
        %v254 = vadd.f32 %v220, %v251
        %255 = vst.msk [vmem:[#allocation2] sm:$0xff] %vm237, %v254
        %s256 = scalar_lea.vmem [#allocation2], 8
        %v257 = vld [vmem:[%s256] sm:$0xff]
        %s258 = scalar_lea.vmem [#allocation5], 16
        %v259 = vld [vmem:[%s258] sm:$0xf]
        %v260 = vld [vmem:[%s258 + $0x4] sm:$0xf]
        %v261 = vld [vmem:[%s258 + $0x8] sm:$0xf]
        %v262 = vld [vmem:[%s258 + $0xc] sm:$0xf]
        %v267 = vunpack.c.l.b16 %v259
        %v268 = vunpack.c.l.b16 %v260
        %v269 = vunpack.c.l.b16 %v261
        %v270 = vunpack.c.l.b16 %v262
        %v271 = vpack.c.b16 %v268, %v267
        %v272 = vpack.c.b16 %v270, %v269
        %275 = vmatpush.bf16.msra.mxu0 0
        %276 = vmatpush.bf16.msra.mxu0 0
        %277 = vmatpush.bf16.msra.mxu0 0
        %278 = vmatpush.bf16.msra.mxu0 0
        %279 = vmatpush.bf16.msra.mxu0 0
        %280 = vmatpush.bf16.msra.mxu0 0
        %281 = vmatpush.bf16.msra.mxu0 %v272
        %282 = vmatpush.bf16.msra.mxu0 %v271
        %283 = vmatmul.bf16.gmra.mxu0 %v239
        %v284 = vpop.f32.mrf.mxu0
        %v285 = vadd.f32 0.0, %v284
        %v286 = vpop.f32.mrf.mxu0
        %287 = vdwg.mxu0
        %v288 = vadd.f32 %v257, %v285
        %289 = vst.msk [vmem:[%s256] sm:$0xff] %vm237, %v288
        %s290 = scalar_lea.vmem [#allocation2], 16
        %v291 = vld [vmem:[%s290] sm:$0xff]
        %s292 = scalar_lea.vmem [#allocation5], 32
        %v293 = vld [vmem:[%s292] sm:$0xf]
        %v294 = vld [vmem:[%s292 + $0x4] sm:$0xf]
        %v295 = vld [vmem:[%s292 + $0x8] sm:$0xf]
        %v296 = vld [vmem:[%s292 + $0xc] sm:$0xf]
        %v301 = vunpack.c.l.b16 %v293
        %v302 = vunpack.c.l.b16 %v294
        %v303 = vunpack.c.l.b16 %v295
        %v304 = vunpack.c.l.b16 %v296
        %v305 = vpack.c.b16 %v302, %v301
        %v306 = vpack.c.b16 %v304, %v303
        %309 = vmatpush.bf16.msra.mxu0 0
        %310 = vmatpush.bf16.msra.mxu0 0
        %311 = vmatpush.bf16.msra.mxu0 0
        %312 = vmatpush.bf16.msra.mxu0 0
        %313 = vmatpush.bf16.msra.mxu0 0
        %314 = vmatpush.bf16.msra.mxu0 0
        %315 = vmatpush.bf16.msra.mxu0 %v306
        %316 = vmatpush.bf16.msra.mxu0 %v305
        %317 = vmatmul.bf16.gmra.mxu0 %v239
        %v318 = vpop.f32.mrf.mxu0
        %v319 = vadd.f32 0.0, %v318
        %v320 = vpop.f32.mrf.mxu0
        %321 = vdwg.mxu0
        %v322 = vadd.f32 %v291, %v319
        %323 = vst.msk [vmem:[%s290] sm:$0xff] %vm237, %v322
        // Predicated region
        $region41: #{self_attention_forward.2} parent=27 // pred_check
          %p324 = pneg %p211
        $region42: #{self_attention_forward.2} parent=27 // pred_check_branch
          %326 = sbr.rel (%p324) target = $region44
        $region43: #{self_attention_forward.2} parent=27 // pred_region
          %v327 = vld [vmem:[#allocation2] sm:$0xff]
          %v328 = vld [vmem:[#allocation2 + $0x8] sm:$0xff]
          %v329 = vld [vmem:[#allocation2 + $0x10] sm:$0xff]
          %v330 = vpack.c.bf16 %v327, %v327
          %v331 = vpack.c.bf16 %v328, %v328
          %v332 = vpack.c.bf16 %v329, %v329
          %vm333 = vcmask 257024
          %334 = vst.msk [vmem:[%s208] sm:$0xf] %vm333, %v330
          %335 = vst.msk [vmem:[%s208 + $0x4] sm:$0xf] %vm333, %v331
          %336 = vst.msk [vmem:[%s208 + $0x8] sm:$0xf] %vm333, %v332
        $region44: #{self_attention_forward.2} parent=27 // pred_fallthru
          _
        %s337 = sand.u32 %s102, 1
        %s338 = sand.u32 %s102, 1
        %s339 = smul.addr %s338, 12
        %s340 = scalar_lea.vmem [#allocation7], %s339
        // Predicated region
        $region45: #{self_attention_forward.2} parent=27 // pred_check
          %p341 = pneg %p112
        $region46: #{self_attention_forward.2} parent=27 // pred_check_branch
          %343 = sbr.rel (%p341) target = $region48
        $region47: #{self_attention_forward.2} parent=27 // pred_region
          %s344 = sadd.s32 %s23, %s22
          %s345 = smul.addr %s344, 4
          %s346 = scalar_lea.vmem %s2, %s345
          // Predicated region
          $region49: #{self_attention_forward.2} parent=47 // pred_check
            _
          $region50: #{self_attention_forward.2} parent=47 // pred_check_branch
            %348 = sbr.rel (0) target = $region52
          $region51: #{self_attention_forward.2} parent=47 // pred_region
            // Predicated region
            $region53: #{self_attention_forward.2} parent=51 // pred_check
              _
            $region54: #{self_attention_forward.2} parent=51 // pred_check_branch
              %350 = sbr.rel target = $region56
            $region55: #{self_attention_forward.2} parent=51 // pred_region
              // Predicated region
              $region68: #{self_attention_forward.2} parent=55 // pred_check
                _
              $region69: #{self_attention_forward.2} parent=55 // pred_check_branch
                %370 = sbr.rel (0) target = $region71
              $region70: #{self_attention_forward.2} parent=55 // pred_region
                loop: start=0, step=1, limit=1
                $region72: #{self_attention_forward.2} parent=70 // loop_pre_header
                  _
                $region73: #{self_attention_forward.2} parent=70 // loop_header
                  %s372 = sphi 0, %s376
                  %p373 = scmp.ge.s32.totalorder %s372, 1
                  %s377 = sphi %s340, %s340
                  %s378 = sphi %s346, %s346
                $region74: #{self_attention_forward.2} parent=70 // loop_header_branch
                  %375 = sbr.rel (%p373) target = $region78
                $region75: #{self_attention_forward.2} parent=70 // loop_body
                  _
                $region76: #{self_attention_forward.2} parent=70 // loop_footer
                  %s376 = sadd.s32 1, %s372
                $region77: #{self_attention_forward.2} parent=70 // loop_footer_branch
                  %371 = sbr.rel target = $region73
                $region78: #{self_attention_forward.2} parent=70 // loop_exit
                  _
                %s380 = ssub.s32 16, 1
                loop: start=0, step=1, limit=1
                $region79: #{self_attention_forward.2} parent=70 // loop_pre_header
                  _
                $region80: #{self_attention_forward.2} parent=70 // loop_header
                  %s382 = sphi 0, %s386
                  %p383 = scmp.ge.s32.totalorder %s382, 1
                  %s387 = sphi %s340, %s340
                  %s388 = sphi %s346, %s346
                $region81: #{self_attention_forward.2} parent=70 // loop_header_branch
                  %385 = sbr.rel (%p383) target = $region85
                $region82: #{self_attention_forward.2} parent=70 // loop_body
                  %v389 = vld [vmem:[%s387] sm:%s380]
                  %390 = vst [vmem:[%s388] sm:%s380] %v389
                  %v391 = vld [vmem:[%s387 + $0x4] sm:%s380]
                  %392 = vst [vmem:[%s388 + $0x8] sm:%s380] %v391
                  %v393 = vld [vmem:[%s387 + $0x8] sm:%s380]
                  %394 = vst [vmem:[%s388 + $0x10] sm:%s380] %v393
                $region83: #{self_attention_forward.2} parent=70 // loop_footer
                  %s386 = sadd.s32 1, %s382
                $region84: #{self_attention_forward.2} parent=70 // loop_footer_branch
                  %381 = sbr.rel target = $region80
                $region85: #{self_attention_forward.2} parent=70 // loop_exit
                  _
              $region71: #{self_attention_forward.2} parent=55 // pred_fallthru
                _
            $region56: #{self_attention_forward.2} parent=51 // pred_fallthru
              _
            // Predicated region
            $region57: #{self_attention_forward.2} parent=51 // pred_check
              _
            $region58: #{self_attention_forward.2} parent=51 // pred_check_branch
              %352 = sbr.rel (0) target = $region60
            $region59: #{self_attention_forward.2} parent=51 // pred_region
              %s354 = ssub.s32 16, 1
              loop: start=0, step=1, limit=1
              $region61: #{self_attention_forward.2} parent=59 // loop_pre_header
                _
              $region62: #{self_attention_forward.2} parent=59 // loop_header
                %s356 = sphi 0, %s360
                %p357 = scmp.ge.s32.totalorder %s356, 1
                %s361 = sphi %s340, %s340
                %s362 = sphi %s346, %s346
              $region63: #{self_attention_forward.2} parent=59 // loop_header_branch
                %359 = sbr.rel (%p357) target = $region67
              $region64: #{self_attention_forward.2} parent=59 // loop_body
                %v363 = vld [vmem:[%s361] sm:%s354]
                %364 = vst [vmem:[%s362] sm:%s354] %v363
                %v365 = vld [vmem:[%s361 + $0x4] sm:%s354]
                %366 = vst [vmem:[%s362 + $0x8] sm:%s354] %v365
                %v367 = vld [vmem:[%s361 + $0x8] sm:%s354]
                %368 = vst [vmem:[%s362 + $0x10] sm:%s354] %v367
              $region65: #{self_attention_forward.2} parent=59 // loop_footer
                %s360 = sadd.s32 1, %s356
              $region66: #{self_attention_forward.2} parent=59 // loop_footer_branch
                %355 = sbr.rel target = $region62
              $region67: #{self_attention_forward.2} parent=59 // loop_exit
                _
            $region60: #{self_attention_forward.2} parent=51 // pred_fallthru
              _
          $region52: #{self_attention_forward.2} parent=47 // pred_fallthru
            _
          %395 = vnop
        $region48: #{self_attention_forward.2} parent=27 // pred_fallthru
          _
      $region28: #{self_attention_forward.2} parent=5 // pred_fallthru
        _
      %p396 = scmp.le.s32.totalorder 2, %s12
      // Predicated region
      $region86: #{self_attention_forward.2} parent=5 // pred_check
        %p397 = pneg %p396
      $region87: #{self_attention_forward.2} parent=5 // pred_check_branch
        %399 = sbr.rel (%p397) target = $region89
      $region88: #{self_attention_forward.2} parent=5 // pred_region
        %s400 = ssub.s32 %s12, 2
        // Predicated region
        $region90: #{self_attention_forward.2} parent=88 // pred_check
          %p401 = pneg %p118
        $region91: #{self_attention_forward.2} parent=88 // pred_check_branch
          %403 = sbr.rel (%p401) target = $region93
        $region92: #{self_attention_forward.2} parent=88 // pred_region
          %s404 = sand.u32 %s103, 1
          %s405 = sand.u32 %s103, 1
          %s406 = smul.addr %s405, 12
          %s407 = scalar_lea.vmem [#allocation7], %s406
        $region93: #{self_attention_forward.2} parent=88 // pred_fallthru
          _
      $region89: #{self_attention_forward.2} parent=5 // pred_fallthru
        _
    $region6: #{self_attention_forward.2} parent=1 // loop_footer
      %s16 = sadd.s32 1, %s12
    $region7: #{self_attention_forward.2} parent=1 // loop_footer_branch
      %11 = sbr.rel target = $region3
    $region8: #{self_attention_forward.2} parent=1 // loop_exit
      _
    %408 = vsyncpa [#allocation4], 1
    %s409 = scalar_lea.sflag [#allocation4], 1
    %410 = vsyncpa %s409, 1
    %411 = vsyncpa [#allocation6], 1

// kernel: self_attention_forward.3
$region0: #{self_attention_forward.3}
  #allocation0 [shape = 'u32[]', space=smem, size = 0x4, offset = 0x4, fixed_abs, tag = 'smem constant byte address 0x4 - core index']
  #allocation1 [shape = 'u32[72,128]{1,0:T(1,128)}', space=vmem, size = 0x9000, scoped, tag = 'internal scratch']
  #allocation2 [shape = 'f32[4,8,1]{2,1,0:T(8,128)}', space=vmem, size = 0x4000, scoped, tag = 'scratch operand']
  #allocation3 [shape = 'f32[4,8,1]{2,1,0:T(8,128)}', space=vmem, size = 0x4000, scoped, tag = 'scratch operand']
  #allocation4 [shape = 'f32[4,8,8]{2,1,0:T(8,128)}', space=vmem, size = 0x4000, scoped, tag = 'scratch operand']
  %s0 = inlined_call_operand.vmem [shape: bf16[3,2,8,32], index: 0, kind: input, shape index: {}, may-alias: {0,1,2}]
  %s1 = inlined_call_operand.vmem [shape: bf16[3,2,8,32], index: 1, kind: input, shape index: {}, may-alias: {0,1,2}]
  %s2 = inlined_call_operand.vmem [shape: bf16[3,2,8,32], index: 2, kind: input, shape index: {}, may-alias: {0,1,2}]
  %s3 = inlined_call_operand.vmem [shape: bf16[32,32], index: 3, kind: input, shape index: {}]
  %s4 = inlined_call_operand.hbm [shape: bf16[2,8,32], index: 4, kind: output, shape index: {}]
  %s5 = sld [smem:[#allocation0]]
  $region57: #{self_attention_forward.3} parent=0
    _
  %s7 = ssub.s32 1, %s5
  %s8 = scalar_select 0, %s7, %s5
  $region1: #{self_attention_forward.3} parent=0
    #allocation5 [shape = 'u8[4096]{0}', space=vmem, size = 0x1000, scoped, tag = 'output window, operand 0']
    #allocation6 [shape = 's32[2]{0}', space=sflag, size = 0x8, scoped, tag = 'scoped memory for self_attention_forward.3']
    %9 = vsyncpa [#allocation6], 0
    %s10 = scalar_lea.sflag [#allocation6], 1
    %11 = vsyncpa %s10, 0
    loop: start=0, step=1, limit=4
    $region2: #{self_attention_forward.3} parent=1 // loop_pre_header
      _
    $region3: #{self_attention_forward.3} parent=1 // loop_header
      %s13 = sphi 0, %s17
      %p14 = scmp.ge.s32.totalorder %s13, 4
      %s20 = sphi 0, %s39
      %s21 = sphi 0, %s35
      %s22 = sphi 0, %s31
      %s23 = sphi 0, %s20
      %s24 = sphi 0, %s21
      %s25 = sphi 0, %s22
      %s26 = sphi 0, %s23
      %s27 = sphi 0, %s24
      %s28 = sphi 0, %s25
      %s44 = sphi 0, %s46
      %s47 = sphi 0, %s44
      %s48 = sphi 0, %s47
      %s64 = sphi 0, %s48
      %s72 = sphi 0, %s74
      %s75 = sphi 0, %s72
      %s76 = sphi 0, %s75
      %s92 = sphi 0, %s76
      %s100 = sphi 0, %s102
      %s103 = sphi 0, %s100
      %s104 = sphi 0, %s103
      %s120 = sphi 0, %s104
      %s124 = sphi 0, %s124
      %s126 = sphi 0, %s124
      %s127 = sphi 0, %s126
      %s141 = sphi 0, %s127
      %s149 = sphi 0, %s151
      %s152 = sphi 0, %s149
      %s153 = sphi 0, %s152
      %s169 = sphi 0, %s153
    $region4: #{self_attention_forward.3} parent=1 // loop_header_branch
      %16 = sbr.rel (%p14) target = $region8
    $region5: #{self_attention_forward.3} parent=1 // loop_body
      %s18 = ssub.s32 %s13, 1
      %s19 = ssub.s32 %s13, 2
      %s29 = sadd.s32 1, %s22
      %p30 = scmp.ge.s32.totalorder %s29, 1
      %s31 = scalar_select %p30, 0, %s29
      %s32 = sadd.s32 1, %s21
      %s33 = scalar_select %p30, %s32, %s21
      %p34 = scmp.ge.s32.totalorder %s33, 1
      %s35 = scalar_select %p34, 0, %s33
      %s36 = sadd.s32 1, %s20
      %s37 = scalar_select %p34, %s36, %s20
      %p38 = scmp.ge.s32.totalorder %s37, 2
      %s39 = scalar_select %p38, 0, %s37
      %s40 = ssub.s32 %s20, %s39
      %s41 = ssub.s32 %s21, %s35
      %s42 = sor.u32 %s40, %s41
      %p43 = scmp.eq.s32.totalorder %s42, 0
      %s45 = sadd.s32 %s44, 1
      %s46 = scalar_select %p43, %s44, %s45
      %p49 = pneg %p43
      %p50 = scmp.eq.s32.totalorder %s13, 1
      %p51 = por %p49, %p50
      %p52 = scmp.ne.s32.totalorder %s44, %s47
      %p53 = scmp.eq.s32.totalorder %s13, 0
      %p54 = por %p52, %p53
      %p55 = scmp.ne.s32.totalorder %s44, %s47
      %p56 = scmp.eq.s32.totalorder %s18, 1
      %p57 = por %p55, %p56
      %p58 = scmp.ne.s32.totalorder %s47, %s48
      %p59 = scmp.eq.s32.totalorder %s18, 0
      %p60 = por %p58, %p59
      %p61 = scmp.ne.s32.totalorder %s47, %s48
      %p62 = scmp.eq.s32.totalorder %s19, 1
      %p63 = por %p61, %p62
      %p65 = scmp.ne.s32.totalorder %s48, %s64
      %p66 = scmp.eq.s32.totalorder %s19, 0
      %p67 = por %p65, %p66
      %s68 = ssub.s32 %s20, %s39
      %s69 = ssub.s32 %s22, %s31
      %s70 = sor.u32 %s68, %s69
      %p71 = scmp.eq.s32.totalorder %s70, 0
      %s73 = sadd.s32 %s72, 1
      %s74 = scalar_select %p71, %s72, %s73
      %p77 = pneg %p71
      %p78 = scmp.eq.s32.totalorder %s13, 1
      %p79 = por %p77, %p78
      %p80 = scmp.ne.s32.totalorder %s72, %s75
      %p81 = scmp.eq.s32.totalorder %s13, 0
      %p82 = por %p80, %p81
      %p83 = scmp.ne.s32.totalorder %s72, %s75
      %p84 = scmp.eq.s32.totalorder %s18, 1
      %p85 = por %p83, %p84
      %p86 = scmp.ne.s32.totalorder %s75, %s76
      %p87 = scmp.eq.s32.totalorder %s18, 0
      %p88 = por %p86, %p87
      %p89 = scmp.ne.s32.totalorder %s75, %s76
      %p90 = scmp.eq.s32.totalorder %s19, 1
      %p91 = por %p89, %p90
      %p93 = scmp.ne.s32.totalorder %s76, %s92
      %p94 = scmp.eq.s32.totalorder %s19, 0
      %p95 = por %p93, %p94
      %s96 = ssub.s32 %s20, %s39
      %s97 = ssub.s32 %s22, %s31
      %s98 = sor.u32 %s96, %s97
      %p99 = scmp.eq.s32.totalorder %s98, 0
      %s101 = sadd.s32 %s100, 1
      %s102 = scalar_select %p99, %s100, %s101
      %p105 = pneg %p99
      %p106 = scmp.eq.s32.totalorder %s13, 1
      %p107 = por %p105, %p106
      %p108 = scmp.ne.s32.totalorder %s100, %s103
      %p109 = scmp.eq.s32.totalorder %s13, 0
      %p110 = por %p108, %p109
      %p111 = scmp.ne.s32.totalorder %s100, %s103
      %p112 = scmp.eq.s32.totalorder %s18, 1
      %p113 = por %p111, %p112
      %p114 = scmp.ne.s32.totalorder %s103, %s104
      %p115 = scmp.eq.s32.totalorder %s18, 0
      %p116 = por %p114, %p115
      %p117 = scmp.ne.s32.totalorder %s103, %s104
      %p118 = scmp.eq.s32.totalorder %s19, 1
      %p119 = por %p117, %p118
      %p121 = scmp.ne.s32.totalorder %s104, %s120
      %p122 = scmp.eq.s32.totalorder %s19, 0
      %p123 = por %p121, %p122
      %s125 = sadd.s32 %s124, 1
      %p128 = scmp.eq.s32.totalorder %s13, 1
      %p129 = scmp.ne.s32.totalorder %s124, %s126
      %p130 = scmp.eq.s32.totalorder %s13, 0
      %p131 = por %p129, %p130
      %p132 = scmp.ne.s32.totalorder %s124, %s126
      %p133 = scmp.eq.s32.totalorder %s18, 1
      %p134 = por %p132, %p133
      %p135 = scmp.ne.s32.totalorder %s126, %s127
      %p136 = scmp.eq.s32.totalorder %s18, 0
      %p137 = por %p135, %p136
      %p138 = scmp.ne.s32.totalorder %s126, %s127
      %p139 = scmp.eq.s32.totalorder %s19, 1
      %p140 = por %p138, %p139
      %p142 = scmp.ne.s32.totalorder %s127, %s141
      %p143 = scmp.eq.s32.totalorder %s19, 0
      %p144 = por %p142, %p143
      %s145 = ssub.s32 %s20, %s39
      %s146 = ssub.s32 %s21, %s35
      %s147 = sor.u32 %s145, %s146
      %p148 = scmp.eq.s32.totalorder %s147, 0
      %s150 = sadd.s32 %s149, 1
      %s151 = scalar_select %p148, %s149, %s150
      %p154 = pneg %p148
      %p155 = scmp.eq.s32.totalorder %s13, 1
      %p156 = por %p154, %p155
      %p157 = scmp.ne.s32.totalorder %s149, %s152
      %p158 = scmp.eq.s32.totalorder %s13, 0
      %p159 = por %p157, %p158
      %p160 = scmp.ne.s32.totalorder %s149, %s152
      %p161 = scmp.eq.s32.totalorder %s18, 1
      %p162 = por %p160, %p161
      %p163 = scmp.ne.s32.totalorder %s152, %s153
      %p164 = scmp.eq.s32.totalorder %s18, 0
      %p165 = por %p163, %p164
      %p166 = scmp.ne.s32.totalorder %s152, %s153
      %p167 = scmp.eq.s32.totalorder %s19, 1
      %p168 = por %p166, %p167
      %p170 = scmp.ne.s32.totalorder %s153, %s169
      %p171 = scmp.eq.s32.totalorder %s19, 0
      %p172 = por %p170, %p171
      %p173 = scmp.le.s32.totalorder 1, %s13
      %p174 = scmp.lt.s32.totalorder %s13, 3
      %p175 = pnand %p173, %p174
      %p176 = pneg %p175
      // Predicated region
      $region9: #{self_attention_forward.3} parent=5 // pred_check
        _
      $region10: #{self_attention_forward.3} parent=5 // pred_check_branch
        %178 = sbr.rel (%p175) target = $region12
      $region11: #{self_attention_forward.3} parent=5 // pred_region
        %s179 = ssub.s32 %s13, 1
        // Predicated region
        $region13: #{self_attention_forward.3} parent=11 // pred_check
          %p180 = pneg %p137
        $region14: #{self_attention_forward.3} parent=11 // pred_check_branch
          %182 = sbr.rel (%p180) target = $region16
        $region15: #{self_attention_forward.3} parent=11 // pred_region
          _
        $region16: #{self_attention_forward.3} parent=11 // pred_fallthru
          _
      $region12: #{self_attention_forward.3} parent=5 // pred_fallthru
        _
      %p183 = scmp.lt.s32.totalorder %s13, 2
      // Predicated region
      $region17: #{self_attention_forward.3} parent=5 // pred_check
        %p184 = pneg %p183
      $region18: #{self_attention_forward.3} parent=5 // pred_check_branch
        %186 = sbr.rel (%p184) target = $region20
      $region19: #{self_attention_forward.3} parent=5 // pred_region
        // Predicated region
        $region21: #{self_attention_forward.3} parent=19 // pred_check
          %p187 = pneg %p54
        $region22: #{self_attention_forward.3} parent=19 // pred_check_branch
          %189 = sbr.rel (%p187) target = $region24
        $region23: #{self_attention_forward.3} parent=19 // pred_region
          %p190 = scmp.lt.s32.totalorder %s20, 1
          %s191 = scalar_select %p190, %s20, 1
          %p192 = scmp.lt.s32.totalorder %s21, 0
          %s193 = scalar_select %p192, %s21, 0
          %s194 = sadd.s32 %s193, %s191
          %s195 = smul.addr %s194, 4
          %s196 = scalar_lea.vmem %s0, %s195
        $region24: #{self_attention_forward.3} parent=19 // pred_fallthru
          _
        // Predicated region
        $region25: #{self_attention_forward.3} parent=19 // pred_check
          %p197 = pneg %p82
        $region26: #{self_attention_forward.3} parent=19 // pred_check_branch
          %199 = sbr.rel (%p197) target = $region28
        $region27: #{self_attention_forward.3} parent=19 // pred_region
          %p200 = scmp.lt.s32.totalorder %s20, 1
          %s201 = scalar_select %p200, %s20, 1
          %p202 = scmp.lt.s32.totalorder %s22, 0
          %s203 = scalar_select %p202, %s22, 0
          %s204 = sadd.s32 %s203, %s201
          %s205 = sadd.s32 %s204, 2
          %s206 = smul.addr %s205, 4
          %s207 = scalar_lea.vmem %s1, %s206
        $region28: #{self_attention_forward.3} parent=19 // pred_fallthru
          _
        // Predicated region
        $region29: #{self_attention_forward.3} parent=19 // pred_check
          %p208 = pneg %p110
        $region30: #{self_attention_forward.3} parent=19 // pred_check_branch
          %210 = sbr.rel (%p208) target = $region32
        $region31: #{self_attention_forward.3} parent=19 // pred_region
          %p211 = scmp.lt.s32.totalorder %s20, 1
          %s212 = scalar_select %p211, %s20, 1
          %p213 = scmp.lt.s32.totalorder %s22, 0
          %s214 = scalar_select %p213, %s22, 0
          %s215 = sadd.s32 %s214, %s212
          %s216 = sadd.s32 %s215, 4
          %s217 = smul.addr %s216, 4
          %s218 = scalar_lea.vmem %s2, %s217
        $region32: #{self_attention_forward.3} parent=19 // pred_fallthru
          _
      $region20: #{self_attention_forward.3} parent=5 // pred_fallthru
        _
      %p219 = scmp.le.s32.totalorder 1, %s13
      %p220 = scmp.lt.s32.totalorder %s13, 3
      %p221 = pnand %p219, %p220
      %p222 = pneg %p221
      // Predicated region
      $region33: #{self_attention_forward.3} parent=5 // pred_check
        _
      $region34: #{self_attention_forward.3} parent=5 // pred_check_branch
        %224 = sbr.rel (%p221) target = $region36
      $region35: #{self_attention_forward.3} parent=5 // pred_region
        %s225 = ssub.s32 %s13, 1
        %p226 = scmp.lt.s32.totalorder %s23, 1
        %s227 = scalar_select %p226, %s23, 1
        %p228 = scmp.lt.s32.totalorder %s24, 0
        %s229 = scalar_select %p228, %s24, 0
        %s230 = sadd.s32 %s229, %s227
        %s231 = smul.addr %s230, 4
        %s232 = scalar_lea.vmem %s0, %s231
        %p233 = pneg %p60
        %p234 = pneg %p57
        %p235 = scmp.lt.s32.totalorder %s23, 1
        %s236 = scalar_select %p235, %s23, 1
        %p237 = scmp.lt.s32.totalorder %s25, 0
        %s238 = scalar_select %p237, %s25, 0
        %s239 = sadd.s32 %s238, %s236
        %s240 = sadd.s32 %s239, 2
        %s241 = smul.addr %s240, 4
        %s242 = scalar_lea.vmem %s1, %s241
        %p243 = pneg %p88
        %p244 = pneg %p85
        %p245 = scmp.lt.s32.totalorder %s23, 1
        %s246 = scalar_select %p245, %s23, 1
        %p247 = scmp.lt.s32.totalorder %s25, 0
        %s248 = scalar_select %p247, %s25, 0
        %s249 = sadd.s32 %s248, %s246
        %s250 = sadd.s32 %s249, 4
        %s251 = smul.addr %s250, 4
        %s252 = scalar_lea.vmem %s2, %s251
        %p253 = pneg %p116
        %p254 = pneg %p113
        %p255 = pneg %p137
        %p256 = pneg %p134
        %p257 = pneg %p165
        %p258 = pneg %p162
        %s259 = sand.u32 %s152, 1
        %s260 = scalar_lea.sflag [#allocation6], %s259
        %s261 = sand.u32 %s152, 1
        %s262 = smul.addr %s261, 4
        %s263 = scalar_lea.vmem [#allocation5], %s262
        %p264 = scmp.lt.s32.totalorder %s23, 1
        %s265 = scalar_select %p264, %s23, 1
        %p266 = scmp.lt.s32.totalorder %s24, 0
        %s267 = scalar_select %p266, %s24, 0
        %s268 = sadd.s32 %s267, %s265
        %s269 = smul.addr %s268, 4
        %s270 = scalar_lea.vmem %s0, %s269
        %p271 = scmp.lt.s32.totalorder %s23, 1
        %s272 = scalar_select %p271, %s23, 1
        %p273 = scmp.lt.s32.totalorder %s25, 0
        %s274 = scalar_select %p273, %s25, 0
        %s275 = sadd.s32 %s274, %s272
        %s276 = sadd.s32 %s275, 2
        %s277 = smul.addr %s276, 4
        %s278 = scalar_lea.vmem %s1, %s277
        %p279 = scmp.lt.s32.totalorder %s23, 1
        %s280 = scalar_select %p279, %s23, 1
        %p281 = scmp.lt.s32.totalorder %s25, 0
        %s282 = scalar_select %p281, %s25, 0
        %s283 = sadd.s32 %s282, %s280
        %s284 = sadd.s32 %s283, 4
        %s285 = smul.addr %s284, 4
        %s286 = scalar_lea.vmem %s2, %s285
        %p288 = scmp.eq.s32.totalorder %s25, 0
        // Predicated region
        $region37: #{self_attention_forward.3} parent=35 // pred_check
          %p289 = pneg %p288
        $region38: #{self_attention_forward.3} parent=35 // pred_check_branch
          %291 = sbr.rel (%p289) target = $region40
        $region39: #{self_attention_forward.3} parent=35 // pred_region
          %vm292 = vcmask 7168
          %293 = vst.msk [vmem:[#allocation2] sm:$0xff] %vm292, -inf
          %294 = vst.msk [vmem:[#allocation2 + $0x8] sm:$0xff] %vm292, -inf
          %295 = vst.msk [vmem:[#allocation2 + $0x10] sm:$0xff] %vm292, -inf
          %296 = vst.msk [vmem:[#allocation2 + $0x18] sm:$0xff] %vm292, -inf
          %297 = vst.msk [vmem:[#allocation3] sm:$0xff] %vm292, 0.0
          %298 = vst.msk [vmem:[#allocation3 + $0x8] sm:$0xff] %vm292, 0.0
          %299 = vst.msk [vmem:[#allocation3 + $0x10] sm:$0xff] %vm292, 0.0
          %300 = vst.msk [vmem:[#allocation3 + $0x18] sm:$0xff] %vm292, 0.0
          %vm301 = vcmask 64512
          %302 = vst.msk [vmem:[#allocation4] sm:$0xff] %vm301, 0.0
          %303 = vst.msk [vmem:[#allocation4 + $0x8] sm:$0xff] %vm301, 0.0
          %304 = vst.msk [vmem:[#allocation4 + $0x10] sm:$0xff] %vm301, 0.0
          %305 = vst.msk [vmem:[#allocation4 + $0x18] sm:$0xff] %vm301, 0.0
        $region40: #{self_attention_forward.3} parent=35 // pred_fallthru
          _
        %v306 = vld [vmem:[%s270] sm:$0xf]
        %308 = vrot.lane.b32.xlu0 %v306, 120
        %v309 = vpop.permute.xlu0 %308
        %310 = vrot.lane.b32.xlu0 %v306, 112
        %v311 = vpop.permute.xlu0 %310
        %312 = vrot.lane.b32.xlu0 %v306, 104
        %v313 = vpop.permute.xlu0 %312
        %v316 = vpack.i.b16 %v309, %v306
        %v317 = vshrl.u32 %v306, 16
        %v318 = vshrl.u32 %v309, 16
        %v319 = vpack.i.b16 %v318, %v317
        %v322 = vpack.i.b16 %v313, %v311
        %v323 = vshrl.u32 %v311, 16
        %v324 = vshrl.u32 %v313, 16
        %v325 = vpack.i.b16 %v324, %v323
        %v328 = vunpack.c.l.s4 1983009808
        %v329 = vunpack.c.0.s8 %v328
        %v330 = vperm.slane %v316, %v329
        %v333 = vunpack.c.l.s4 1983009808
        %v334 = vunpack.c.0.s8 %v333
        %v335 = vperm.slane %v322, %v334
        %v336 = vrot.slane %v335, 4
        %vm337 = vcmask 1047556
        %v338 = vsel %vm337, %v336, %v330
        %v339 = vrot.slane %v330, 4
        %v340 = vsel %vm337, %v335, %v339
        %v342 = vunpack.c.l.s4 1934713408
        %v343 = vunpack.c.0.s8 %v342
        %v344 = vperm.slane %v338, %v343
        %v346 = vunpack.c.l.s4 1934713408
        %v347 = vunpack.c.0.s8 %v346
        %v348 = vperm.slane %v340, %v347
        %v349 = vrot.slane %v344, 4
        %v350 = vsel %vm337, 0, %v349
        %v351 = vrot.slane %v348, 4
        %v352 = vsel %vm337, 0, %v351
        %v355 = vunpack.c.l.s4 1983009808
        %v356 = vunpack.c.0.s8 %v355
        %v357 = vperm.slane %v319, %v356
        %v360 = vunpack.c.l.s4 1983009808
        %v361 = vunpack.c.0.s8 %v360
        %v362 = vperm.slane %v325, %v361
        %v363 = vrot.slane %v362, 4
        %v364 = vsel %vm337, %v363, %v357
        %v365 = vrot.slane %v357, 4
        %v366 = vsel %vm337, %v362, %v365
        %v368 = vunpack.c.l.s4 1934713408
        %v369 = vunpack.c.0.s8 %v368
        %v370 = vperm.slane %v364, %v369
        %v372 = vunpack.c.l.s4 1934713408
        %v373 = vunpack.c.0.s8 %v372
        %v374 = vperm.slane %v366, %v373
        %v375 = vrot.slane %v370, 4
        %v376 = vsel %vm337, 0, %v375
        %v377 = vrot.slane %v374, 4
        %v378 = vsel %vm337, 0, %v377
        %v379 = vld [vmem:[%s278] sm:$0xf]
        %381 = vrot.lane.b32.xlu0 %v379, 120
        %v382 = vpop.permute.xlu0 %381
        %383 = vrot.lane.b32.xlu0 %v379, 112
        %v384 = vpop.permute.xlu0 %383
        %385 = vrot.lane.b32.xlu0 %v379, 104
        %v386 = vpop.permute.xlu0 %385
        %v389 = vpack.i.b16 %v382, %v379
        %v390 = vshrl.u32 %v379, 16
        %v391 = vshrl.u32 %v382, 16
        %v392 = vpack.i.b16 %v391, %v390
        %v395 = vpack.i.b16 %v386, %v384
        %v396 = vshrl.u32 %v384, 16
        %v397 = vshrl.u32 %v386, 16
        %v398 = vpack.i.b16 %v397, %v396
        %v401 = vunpack.c.l.s4 1983009808
        %v402 = vunpack.c.0.s8 %v401
        %v403 = vperm.slane %v389, %v402
        %v406 = vunpack.c.l.s4 1983009808
        %v407 = vunpack.c.0.s8 %v406
        %v408 = vperm.slane %v395, %v407
        %v409 = vrot.slane %v408, 4
        %v410 = vsel %vm337, %v409, %v403
        %v411 = vrot.slane %v403, 4
        %v412 = vsel %vm337, %v408, %v411
        %v414 = vunpack.c.l.s4 1934713408
        %v415 = vunpack.c.0.s8 %v414
        %v416 = vperm.slane %v410, %v415
        %v418 = vunpack.c.l.s4 1934713408
        %v419 = vunpack.c.0.s8 %v418
        %v420 = vperm.slane %v412, %v419
        %v421 = vrot.slane %v416, 4
        %v422 = vsel %vm337, 0, %v421
        %v423 = vrot.slane %v420, 4
        %v424 = vsel %vm337, 0, %v423
        %v427 = vunpack.c.l.s4 1983009808
        %v428 = vunpack.c.0.s8 %v427
        %v429 = vperm.slane %v392, %v428
        %v432 = vunpack.c.l.s4 1983009808
        %v433 = vunpack.c.0.s8 %v432
        %v434 = vperm.slane %v398, %v433
        %v435 = vrot.slane %v434, 4
        %v436 = vsel %vm337, %v435, %v429
        %v437 = vrot.slane %v429, 4
        %v438 = vsel %vm337, %v434, %v437
        %v440 = vunpack.c.l.s4 1934713408
        %v441 = vunpack.c.0.s8 %v440
        %v442 = vperm.slane %v436, %v441
        %v444 = vunpack.c.l.s4 1934713408
        %v445 = vunpack.c.0.s8 %v444
        %v446 = vperm.slane %v438, %v445
        %v447 = vrot.slane %v442, 4
        %v448 = vsel %vm337, 0, %v447
        %v449 = vrot.slane %v446, 4
        %v450 = vsel %vm337, 0, %v449
        %v451 = vld [vmem:[%s286] sm:$0xf]
        %453 = vrot.lane.b32.xlu0 %v451, 120
        %v454 = vpop.permute.xlu0 %453
        %455 = vrot.lane.b32.xlu0 %v451, 112
        %v456 = vpop.permute.xlu0 %455
        %457 = vrot.lane.b32.xlu0 %v451, 104
        %v458 = vpop.permute.xlu0 %457
        %v461 = vpack.i.b16 %v454, %v451
        %v462 = vshrl.u32 %v451, 16
        %v463 = vshrl.u32 %v454, 16
        %v464 = vpack.i.b16 %v463, %v462
        %v467 = vpack.i.b16 %v458, %v456
        %v468 = vshrl.u32 %v456, 16
        %v469 = vshrl.u32 %v458, 16
        %v470 = vpack.i.b16 %v469, %v468
        %v473 = vunpack.c.l.s4 1983009808
        %v474 = vunpack.c.0.s8 %v473
        %v475 = vperm.slane %v461, %v474
        %v478 = vunpack.c.l.s4 1983009808
        %v479 = vunpack.c.0.s8 %v478
        %v480 = vperm.slane %v467, %v479
        %v481 = vrot.slane %v480, 4
        %v482 = vsel %vm337, %v481, %v475
        %v483 = vrot.slane %v475, 4
        %v484 = vsel %vm337, %v480, %v483
        %v486 = vunpack.c.l.s4 1934713408
        %v487 = vunpack.c.0.s8 %v486
        %v488 = vperm.slane %v482, %v487
        %v490 = vunpack.c.l.s4 1934713408
        %v491 = vunpack.c.0.s8 %v490
        %v492 = vperm.slane %v484, %v491
        %v493 = vrot.slane %v488, 4
        %v494 = vsel %vm337, 0, %v493
        %v495 = vrot.slane %v492, 4
        %v496 = vsel %vm337, 0, %v495
        %v499 = vunpack.c.l.s4 1983009808
        %v500 = vunpack.c.0.s8 %v499
        %v501 = vperm.slane %v464, %v500
        %v504 = vunpack.c.l.s4 1983009808
        %v505 = vunpack.c.0.s8 %v504
        %v506 = vperm.slane %v470, %v505
        %v507 = vrot.slane %v506, 4
        %v508 = vsel %vm337, %v507, %v501
        %v509 = vrot.slane %v501, 4
        %v510 = vsel %vm337, %v506, %v509
        %v512 = vunpack.c.l.s4 1934713408
        %v513 = vunpack.c.0.s8 %v512
        %v514 = vperm.slane %v508, %v513
        %v516 = vunpack.c.l.s4 1934713408
        %v517 = vunpack.c.0.s8 %v516
        %v518 = vperm.slane %v510, %v517
        %v519 = vrot.slane %v514, 4
        %v520 = vsel %vm337, 0, %v519
        %v521 = vrot.slane %v518, 4
        %v522 = vsel %vm337, 0, %v521
        %v523 = vsel %vm337, %v351, %v344
        %v525 = vunpack.c.l.s4 1983009808
        %v526 = vunpack.c.0.s8 %v525
        %v527 = vperm.slane %v523, %v526
        %v528 = vrot.slane %v352, 4
        %v529 = vsel %vm337, %v528, %v350
        %v531 = vunpack.c.l.s4 1983009808
        %v532 = vunpack.c.0.s8 %v531
        %v533 = vperm.slane %v529, %v532
        %v534 = vrot.slane %v533, 4
        %v535 = vsel %vm337, %v534, %v527
        %v537 = vunpack.c.l.s4 1934713408
        %v538 = vunpack.c.0.s8 %v537
        %v539 = vperm.slane %v535, %v538
        %v540 = vrot.slane %v539, 4
        %v541 = vsel %vm337, 0, %v540
        %v542 = vsel %vm337, %v377, %v370
        %v544 = vunpack.c.l.s4 1983009808
        %v545 = vunpack.c.0.s8 %v544
        %v546 = vperm.slane %v542, %v545
        %v547 = vrot.slane %v378, 4
        %v548 = vsel %vm337, %v547, %v376
        %v550 = vunpack.c.l.s4 1983009808
        %v551 = vunpack.c.0.s8 %v550
        %v552 = vperm.slane %v548, %v551
        %v553 = vrot.slane %v552, 4
        %v554 = vsel %vm337, %v553, %v546
        %v556 = vunpack.c.l.s4 1934713408
        %v557 = vunpack.c.0.s8 %v556
        %v558 = vperm.slane %v554, %v557
        %v559 = vrot.slane %v558, 4
        %v560 = vsel %vm337, 0, %v559
        %v563 = vpack.i.b16 %v558, %v539
        %v564 = vshrl.u32 %v539, 16
        %v565 = vshrl.u32 %v558, 16
        %v566 = vpack.i.b16 %v565, %v564
        %v569 = vpack.i.b16 %v560, %v541
        %v570 = vshrl.u32 %v541, 16
        %v571 = vshrl.u32 %v560, 16
        %v572 = vpack.i.b16 %v571, %v570
        %573 = vxpose.xlu0.c.b16.start [1/8] %v416, 128
        %574 = vxpose.xlu0.c.b16.cont [2/8] 0, 128
        %575 = vxpose.xlu0.c.b16.cont [3/8] 0, 128
        %576 = vxpose.xlu0.c.b16.cont [4/8] 0, 128
        %577 = vxpose.xlu0.c.b16.cont [5/8] 0, 128
        %578 = vxpose.xlu0.c.b16.cont [6/8] 0, 128
        %579 = vxpose.xlu0.c.b16.cont [7/8] 0, 128
        %580 = vxpose.xlu0.c.b16.end [8/8] 0, 128
        %v581 = vpop.trf.xlu0
        %v582 = vpop.trf.xlu0
        %v583 = vpop.trf.xlu0
        %v584 = vpop.trf.xlu0
        %v585 = vpop.trf.xlu0
        %v586 = vpop.trf.xlu0
        %v587 = vpop.trf.xlu0
        %v588 = vpop.trf.xlu0
        %589 = vxpose.xlu0.c.b16.start [1/8] %v442, 128
        %590 = vxpose.xlu0.c.b16.cont [2/8] 0, 128
        %591 = vxpose.xlu0.c.b16.cont [3/8] 0, 128
        %592 = vxpose.xlu0.c.b16.cont [4/8] 0, 128
        %593 = vxpose.xlu0.c.b16.cont [5/8] 0, 128
        %594 = vxpose.xlu0.c.b16.cont [6/8] 0, 128
        %595 = vxpose.xlu0.c.b16.cont [7/8] 0, 128
        %596 = vxpose.xlu0.c.b16.end [8/8] 0, 128
        %v597 = vpop.trf.xlu0
        %v598 = vpop.trf.xlu0
        %v599 = vpop.trf.xlu0
        %v600 = vpop.trf.xlu0
        %v601 = vpop.trf.xlu0
        %v602 = vpop.trf.xlu0
        %v603 = vpop.trf.xlu0
        %v604 = vpop.trf.xlu0
        %605 = vxpose.xlu0.c.b16.start [1/8] %v422, 128
        %606 = vxpose.xlu0.c.b16.cont [2/8] 0, 128
        %607 = vxpose.xlu0.c.b16.cont [3/8] 0, 128
        %608 = vxpose.xlu0.c.b16.cont [4/8] 0, 128
        %609 = vxpose.xlu0.c.b16.cont [5/8] 0, 128
        %610 = vxpose.xlu0.c.b16.cont [6/8] 0, 128
        %611 = vxpose.xlu0.c.b16.cont [7/8] 0, 128
        %612 = vxpose.xlu0.c.b16.end [8/8] 0, 128
        %v613 = vpop.trf.xlu0
        %v614 = vpop.trf.xlu0
        %v615 = vpop.trf.xlu0
        %v616 = vpop.trf.xlu0
        %v617 = vpop.trf.xlu0
        %v618 = vpop.trf.xlu0
        %v619 = vpop.trf.xlu0
        %v620 = vpop.trf.xlu0
        %621 = vxpose.xlu0.c.b16.start [1/8] %v448, 128
        %622 = vxpose.xlu0.c.b16.cont [2/8] 0, 128
        %623 = vxpose.xlu0.c.b16.cont [3/8] 0, 128
        %624 = vxpose.xlu0.c.b16.cont [4/8] 0, 128
        %625 = vxpose.xlu0.c.b16.cont [5/8] 0, 128
        %626 = vxpose.xlu0.c.b16.cont [6/8] 0, 128
        %627 = vxpose.xlu0.c.b16.cont [7/8] 0, 128
        %628 = vxpose.xlu0.c.b16.end [8/8] 0, 128
        %v629 = vpop.trf.xlu0
        %v630 = vpop.trf.xlu0
        %v631 = vpop.trf.xlu0
        %v632 = vpop.trf.xlu0
        %v633 = vpop.trf.xlu0
        %v634 = vpop.trf.xlu0
        %v635 = vpop.trf.xlu0
        %v636 = vpop.trf.xlu0
        %637 = vxpose.xlu0.c.b16.start [1/8] %v420, 128
        %638 = vxpose.xlu0.c.b16.cont [2/8] 0, 128
        %639 = vxpose.xlu0.c.b16.cont [3/8] 0, 128
        %640 = vxpose.xlu0.c.b16.cont [4/8] 0, 128
        %641 = vxpose.xlu0.c.b16.cont [5/8] 0, 128
        %642 = vxpose.xlu0.c.b16.cont [6/8] 0, 128
        %643 = vxpose.xlu0.c.b16.cont [7/8] 0, 128
        %644 = vxpose.xlu0.c.b16.end [8/8] 0, 128
        %v645 = vpop.trf.xlu0
        %v646 = vpop.trf.xlu0
        %v647 = vpop.trf.xlu0
        %v648 = vpop.trf.xlu0
        %v649 = vpop.trf.xlu0
        %v650 = vpop.trf.xlu0
        %v651 = vpop.trf.xlu0
        %v652 = vpop.trf.xlu0
        %653 = vxpose.xlu0.c.b16.start [1/8] %v446, 128
        %654 = vxpose.xlu0.c.b16.cont [2/8] 0, 128
        %655 = vxpose.xlu0.c.b16.cont [3/8] 0, 128
        %656 = vxpose.xlu0.c.b16.cont [4/8] 0, 128
        %657 = vxpose.xlu0.c.b16.cont [5/8] 0, 128
        %658 = vxpose.xlu0.c.b16.cont [6/8] 0, 128
        %659 = vxpose.xlu0.c.b16.cont [7/8] 0, 128
        %660 = vxpose.xlu0.c.b16.end [8/8] 0, 128
        %v661 = vpop.trf.xlu0
        %v662 = vpop.trf.xlu0
        %v663 = vpop.trf.xlu0
        %v664 = vpop.trf.xlu0
        %v665 = vpop.trf.xlu0
        %v666 = vpop.trf.xlu0
        %v667 = vpop.trf.xlu0
        %v668 = vpop.trf.xlu0
        %669 = vxpose.xlu0.c.b16.start [1/8] %v424, 128
        %670 = vxpose.xlu0.c.b16.cont [2/8] 0, 128
        %671 = vxpose.xlu0.c.b16.cont [3/8] 0, 128
        %672 = vxpose.xlu0.c.b16.cont [4/8] 0, 128
        %673 = vxpose.xlu0.c.b16.cont [5/8] 0, 128
        %674 = vxpose.xlu0.c.b16.cont [6/8] 0, 128
        %675 = vxpose.xlu0.c.b16.cont [7/8] 0, 128
        %676 = vxpose.xlu0.c.b16.end [8/8] 0, 128
        %v677 = vpop.trf.xlu0
        %v678 = vpop.trf.xlu0
        %v679 = vpop.trf.xlu0
        %v680 = vpop.trf.xlu0
        %v681 = vpop.trf.xlu0
        %v682 = vpop.trf.xlu0
        %v683 = vpop.trf.xlu0
        %v684 = vpop.trf.xlu0
        %685 = vxpose.xlu0.c.b16.start [1/8] %v450, 128
        %686 = vxpose.xlu0.c.b16.cont [2/8] 0, 128
        %687 = vxpose.xlu0.c.b16.cont [3/8] 0, 128
        %688 = vxpose.xlu0.c.b16.cont [4/8] 0, 128
        %689 = vxpose.xlu0.c.b16.cont [5/8] 0, 128
        %690 = vxpose.xlu0.c.b16.cont [6/8] 0, 128
        %691 = vxpose.xlu0.c.b16.cont [7/8] 0, 128
        %692 = vxpose.xlu0.c.b16.end [8/8] 0, 128
        %v693 = vpop.trf.xlu0
        %v694 = vpop.trf.xlu0
        %v695 = vpop.trf.xlu0
        %v696 = vpop.trf.xlu0
        %v697 = vpop.trf.xlu0
        %v698 = vpop.trf.xlu0
        %v699 = vpop.trf.xlu0
        %v700 = vpop.trf.xlu0
        %v701 = vrot.slane %v645, 4
        %v702 = vsel %vm337, %v701, %v581
        %v704 = vunpack.c.l.s4 1983009808
        %v705 = vunpack.c.0.s8 %v704
        %v706 = vperm.slane %v702, %v705
        %v707 = vrot.slane %v677, 4
        %v708 = vsel %vm337, %v707, %v613
        %v710 = vunpack.c.l.s4 1983009808
        %v711 = vunpack.c.0.s8 %v710
        %v712 = vperm.slane %v708, %v711
        %v713 = vrot.slane %v712, 4
        %v714 = vsel %vm337, %v713, %v706
        %v715 = vrot.slane %v706, 4
        %v716 = vsel %vm337, %v712, %v715
        %v718 = vunpack.c.l.s4 1934713408
        %v719 = vunpack.c.0.s8 %v718
        %v720 = vperm.slane %v714, %v719
        %v722 = vunpack.c.l.s4 1934713408
        %v723 = vunpack.c.0.s8 %v722
        %v724 = vperm.slane %v716, %v723
        %v725 = vrot.slane %v720, 4
        %v726 = vsel %vm337, 0, %v725
        %v727 = vrot.slane %v724, 4
        %v728 = vsel %vm337, 0, %v727
        %v729 = vrot.slane %v661, 4
        %v730 = vsel %vm337, %v729, %v597
        %v732 = vunpack.c.l.s4 1983009808
        %v733 = vunpack.c.0.s8 %v732
        %v734 = vperm.slane %v730, %v733
        %v735 = vrot.slane %v693, 4
        %v736 = vsel %vm337, %v735, %v629
        %v738 = vunpack.c.l.s4 1983009808
        %v739 = vunpack.c.0.s8 %v738
        %v740 = vperm.slane %v736, %v739
        %v741 = vrot.slane %v740, 4
        %v742 = vsel %vm337, %v741, %v734
        %v743 = vrot.slane %v734, 4
        %v744 = vsel %vm337, %v740, %v743
        %v746 = vunpack.c.l.s4 1934713408
        %v747 = vunpack.c.0.s8 %v746
        %v748 = vperm.slane %v742, %v747
        %v750 = vunpack.c.l.s4 1934713408
        %v751 = vunpack.c.0.s8 %v750
        %v752 = vperm.slane %v744, %v751
        %v753 = vrot.slane %v748, 4
        %v754 = vsel %vm337, 0, %v753
        %v755 = vrot.slane %v752, 4
        %v756 = vsel %vm337, 0, %v755
        %v759 = vpack.i.b16 %v748, %v720
        %v761 = vshrl.u32 %v720, 16
        %v762 = vshrl.u32 %v748, 16
        %v763 = vpack.i.b16 %v762, %v761
        %v767 = vpack.i.b16 %v754, %v726
        %v769 = vshrl.u32 %v726, 16
        %v770 = vshrl.u32 %v754, 16
        %v771 = vpack.i.b16 %v770, %v769
        %v775 = vpack.i.b16 %v752, %v724
        %v777 = vshrl.u32 %v724, 16
        %v778 = vshrl.u32 %v752, 16
        %v779 = vpack.i.b16 %v778, %v777
        %v783 = vpack.i.b16 %v756, %v728
        %v785 = vshrl.u32 %v728, 16
        %v786 = vshrl.u32 %v756, 16
        %v787 = vpack.i.b16 %v786, %v785
        %789 = vxpose.xlu0.c.b16.start [1/8] %v759, 128
        %790 = vxpose.xlu0.c.b16.cont [2/8] 0, 128
        %791 = vxpose.xlu0.c.b16.cont [3/8] 0, 128
        %792 = vxpose.xlu0.c.b16.cont [4/8] 0, 128
        %793 = vxpose.xlu0.c.b16.cont [5/8] 0, 128
        %794 = vxpose.xlu0.c.b16.cont [6/8] 0, 128
        %795 = vxpose.xlu0.c.b16.cont [7/8] 0, 128
        %796 = vxpose.xlu0.c.b16.end [8/8] 0, 128
        %v797 = vpop.trf.xlu0
        %v798 = vpop.trf.xlu0
        %v799 = vpop.trf.xlu0
        %v800 = vpop.trf.xlu0
        %v801 = vpop.trf.xlu0
        %v802 = vpop.trf.xlu0
        %v803 = vpop.trf.xlu0
        %v804 = vpop.trf.xlu0
        %805 = vxpose.xlu0.c.b16.start [1/8] %v763, 128
        %806 = vxpose.xlu0.c.b16.cont [2/8] 0, 128
        %807 = vxpose.xlu0.c.b16.cont [3/8] 0, 128
        %808 = vxpose.xlu0.c.b16.cont [4/8] 0, 128
        %809 = vxpose.xlu0.c.b16.cont [5/8] 0, 128
        %810 = vxpose.xlu0.c.b16.cont [6/8] 0, 128
        %811 = vxpose.xlu0.c.b16.cont [7/8] 0, 128
        %812 = vxpose.xlu0.c.b16.end [8/8] 0, 128
        %v813 = vpop.trf.xlu0
        %v814 = vpop.trf.xlu0
        %v815 = vpop.trf.xlu0
        %v816 = vpop.trf.xlu0
        %v817 = vpop.trf.xlu0
        %v818 = vpop.trf.xlu0
        %v819 = vpop.trf.xlu0
        %v820 = vpop.trf.xlu0
        %821 = vxpose.xlu0.c.b16.start [1/8] %v767, 128
        %822 = vxpose.xlu0.c.b16.cont [2/8] 0, 128
        %823 = vxpose.xlu0.c.b16.cont [3/8] 0, 128
        %824 = vxpose.xlu0.c.b16.cont [4/8] 0, 128
        %825 = vxpose.xlu0.c.b16.cont [5/8] 0, 128
        %826 = vxpose.xlu0.c.b16.cont [6/8] 0, 128
        %827 = vxpose.xlu0.c.b16.cont [7/8] 0, 128
        %828 = vxpose.xlu0.c.b16.end [8/8] 0, 128
        %v829 = vpop.trf.xlu0
        %v830 = vpop.trf.xlu0
        %v831 = vpop.trf.xlu0
        %v832 = vpop.trf.xlu0
        %v833 = vpop.trf.xlu0
        %v834 = vpop.trf.xlu0
        %v835 = vpop.trf.xlu0
        %v836 = vpop.trf.xlu0
        %837 = vxpose.xlu0.c.b16.start [1/8] %v771, 128
        %838 = vxpose.xlu0.c.b16.cont [2/8] 0, 128
        %839 = vxpose.xlu0.c.b16.cont [3/8] 0, 128
        %840 = vxpose.xlu0.c.b16.cont [4/8] 0, 128
        %841 = vxpose.xlu0.c.b16.cont [5/8] 0, 128
        %842 = vxpose.xlu0.c.b16.cont [6/8] 0, 128
        %843 = vxpose.xlu0.c.b16.cont [7/8] 0, 128
        %844 = vxpose.xlu0.c.b16.end [8/8] 0, 128
        %v845 = vpop.trf.xlu0
        %v846 = vpop.trf.xlu0
        %v847 = vpop.trf.xlu0
        %v848 = vpop.trf.xlu0
        %v849 = vpop.trf.xlu0
        %v850 = vpop.trf.xlu0
        %v851 = vpop.trf.xlu0
        %v852 = vpop.trf.xlu0
        %853 = vxpose.xlu0.c.b16.start [1/8] %v775, 128
        %854 = vxpose.xlu0.c.b16.cont [2/8] 0, 128
        %855 = vxpose.xlu0.c.b16.cont [3/8] 0, 128
        %856 = vxpose.xlu0.c.b16.cont [4/8] 0, 128
        %857 = vxpose.xlu0.c.b16.cont [5/8] 0, 128
        %858 = vxpose.xlu0.c.b16.cont [6/8] 0, 128
        %859 = vxpose.xlu0.c.b16.cont [7/8] 0, 128
        %860 = vxpose.xlu0.c.b16.end [8/8] 0, 128
        %v861 = vpop.trf.xlu0
        %v862 = vpop.trf.xlu0
        %v863 = vpop.trf.xlu0
        %v864 = vpop.trf.xlu0
        %v865 = vpop.trf.xlu0
        %v866 = vpop.trf.xlu0
        %v867 = vpop.trf.xlu0
        %v868 = vpop.trf.xlu0
        %869 = vxpose.xlu0.c.b16.start [1/8] %v779, 128
        %870 = vxpose.xlu0.c.b16.cont [2/8] 0, 128
        %871 = vxpose.xlu0.c.b16.cont [3/8] 0, 128
        %872 = vxpose.xlu0.c.b16.cont [4/8] 0, 128
        %873 = vxpose.xlu0.c.b16.cont [5/8] 0, 128
        %874 = vxpose.xlu0.c.b16.cont [6/8] 0, 128
        %875 = vxpose.xlu0.c.b16.cont [7/8] 0, 128
        %876 = vxpose.xlu0.c.b16.end [8/8] 0, 128
        %v877 = vpop.trf.xlu0
        %v878 = vpop.trf.xlu0
        %v879 = vpop.trf.xlu0
        %v880 = vpop.trf.xlu0
        %v881 = vpop.trf.xlu0
        %v882 = vpop.trf.xlu0
        %v883 = vpop.trf.xlu0
        %v884 = vpop.trf.xlu0
        %885 = vxpose.xlu0.c.b16.start [1/8] %v783, 128
        %886 = vxpose.xlu0.c.b16.cont [2/8] 0, 128
        %887 = vxpose.xlu0.c.b16.cont [3/8] 0, 128
        %888 = vxpose.xlu0.c.b16.cont [4/8] 0, 128
        %889 = vxpose.xlu0.c.b16.cont [5/8] 0, 128
        %890 = vxpose.xlu0.c.b16.cont [6/8] 0, 128
        %891 = vxpose.xlu0.c.b16.cont [7/8] 0, 128
        %892 = vxpose.xlu0.c.b16.end [8/8] 0, 128
        %v893 = vpop.trf.xlu0
        %v894 = vpop.trf.xlu0
        %v895 = vpop.trf.xlu0
        %v896 = vpop.trf.xlu0
        %v897 = vpop.trf.xlu0
        %v898 = vpop.trf.xlu0
        %v899 = vpop.trf.xlu0
        %v900 = vpop.trf.xlu0
        %901 = vxpose.xlu0.c.b16.start [1/8] %v787, 128
        %902 = vxpose.xlu0.c.b16.cont [2/8] 0, 128
        %903 = vxpose.xlu0.c.b16.cont [3/8] 0, 128
        %904 = vxpose.xlu0.c.b16.cont [4/8] 0, 128
        %905 = vxpose.xlu0.c.b16.cont [5/8] 0, 128
        %906 = vxpose.xlu0.c.b16.cont [6/8] 0, 128
        %907 = vxpose.xlu0.c.b16.cont [7/8] 0, 128
        %908 = vxpose.xlu0.c.b16.end [8/8] 0, 128
        %v909 = vpop.trf.xlu0
        %v910 = vpop.trf.xlu0
        %v911 = vpop.trf.xlu0
        %v912 = vpop.trf.xlu0
        %v913 = vpop.trf.xlu0
        %v914 = vpop.trf.xlu0
        %v915 = vpop.trf.xlu0
        %v916 = vpop.trf.xlu0
        %v917 = vrot.slane %v861, 4
        %v918 = vsel %vm337, %v917, %v797
        %v920 = vunpack.c.l.s4 1983009808
        %v921 = vunpack.c.0.s8 %v920
        %v922 = vperm.slane %v918, %v921
        %v923 = vrot.slane %v893, 4
        %v924 = vsel %vm337, %v923, %v829
        %v926 = vunpack.c.l.s4 1983009808
        %v927 = vunpack.c.0.s8 %v926
        %v928 = vperm.slane %v924, %v927
        %v929 = vrot.slane %v928, 4
        %v930 = vsel %vm337, %v929, %v922
        %v932 = vunpack.c.l.s4 1934713408
        %v933 = vunpack.c.0.s8 %v932
        %v934 = vperm.slane %v930, %v933
        %v935 = vrot.slane %v934, 4
        %v936 = vsel %vm337, 0, %v935
        %v937 = vrot.slane %v877, 4
        %v938 = vsel %vm337, %v937, %v813
        %v940 = vunpack.c.l.s4 1983009808
        %v941 = vunpack.c.0.s8 %v940
        %v942 = vperm.slane %v938, %v941
        %v943 = vrot.slane %v909, 4
        %v944 = vsel %vm337, %v943, %v845
        %v946 = vunpack.c.l.s4 1983009808
        %v947 = vunpack.c.0.s8 %v946
        %v948 = vperm.slane %v944, %v947
        %v949 = vrot.slane %v948, 4
        %v950 = vsel %vm337, %v949, %v942
        %v952 = vunpack.c.l.s4 1934713408
        %v953 = vunpack.c.0.s8 %v952
        %v954 = vperm.slane %v950, %v953
        %v955 = vrot.slane %v954, 4
        %v956 = vsel %vm337, 0, %v955
        %v959 = vpack.i.b16 %v954, %v934
        %v960 = vshrl.u32 %v934, 16
        %v961 = vshrl.u32 %v954, 16
        %v962 = vpack.i.b16 %v961, %v960
        %v965 = vpack.i.b16 %v956, %v936
        %v966 = vshrl.u32 %v936, 16
        %v967 = vshrl.u32 %v956, 16
        %v968 = vpack.i.b16 %v967, %v966
        %vm969 = vcmask 64512
        %v971 = vsel %vm969, %v563, 0
        %vm973 = vcmask 1043456
        %v975 = vsel %vm973, %v959, 0
        %977 = vmatpush.bf16.msra.mxu0 0
        %978 = vmatpush.bf16.msra.mxu0 0
        %979 = vmatpush.bf16.msra.mxu0 0
        %980 = vmatpush.bf16.msra.mxu0 0
        %981 = vmatpush.bf16.msra.mxu0 0
        %982 = vmatpush.bf16.msra.mxu0 0
        %983 = vmatpush.bf16.msra.mxu0 0
        %984 = vmatpush.bf16.msra.mxu0 %v975
        %985 = vmatmul.bf16.gmra.mxu0 %v971
        %v986 = vpop.f32.mrf.mxu0
        %v987 = vadd.f32 0.0, %v986
        %v988 = vpop.f32.mrf.mxu0
        %989 = vdwg.mxu0
        %v991 = vsel %vm969, %v566, 0
        %v994 = vsel %vm973, %v962, 0
        %996 = vmatpush.bf16.msra.mxu0 0
        %997 = vmatpush.bf16.msra.mxu0 0
        %998 = vmatpush.bf16.msra.mxu0 0
        %999 = vmatpush.bf16.msra.mxu0 0
        %1000 = vmatpush.bf16.msra.mxu0 0
        %1001 = vmatpush.bf16.msra.mxu0 0
        %1002 = vmatpush.bf16.msra.mxu0 0
        %1003 = vmatpush.bf16.msra.mxu0 %v994
        %1004 = vmatmul.bf16.gmra.mxu0 %v991
        %v1005 = vpop.f32.mrf.mxu0
        %v1006 = vadd.f32 0.0, %v1005
        %v1007 = vpop.f32.mrf.mxu0
        %1008 = vdwg.mxu0
        %v1010 = vsel %vm969, %v569, 0
        %v1013 = vsel %vm973, %v965, 0
        %1015 = vmatpush.bf16.msra.mxu0 0
        %1016 = vmatpush.bf16.msra.mxu0 0
        %1017 = vmatpush.bf16.msra.mxu0 0
        %1018 = vmatpush.bf16.msra.mxu0 0
        %1019 = vmatpush.bf16.msra.mxu0 0
        %1020 = vmatpush.bf16.msra.mxu0 0
        %1021 = vmatpush.bf16.msra.mxu0 0
        %1022 = vmatpush.bf16.msra.mxu0 %v1013
        %1023 = vmatmul.bf16.gmra.mxu0 %v1010
        %v1024 = vpop.f32.mrf.mxu0
        %v1025 = vadd.f32 0.0, %v1024
        %v1026 = vpop.f32.mrf.mxu0
        %1027 = vdwg.mxu0
        %v1029 = vsel %vm969, %v572, 0
        %v1032 = vsel %vm973, %v968, 0
        %1034 = vmatpush.bf16.msra.mxu0 0
        %1035 = vmatpush.bf16.msra.mxu0 0
        %1036 = vmatpush.bf16.msra.mxu0 0
        %1037 = vmatpush.bf16.msra.mxu0 0
        %1038 = vmatpush.bf16.msra.mxu0 0
        %1039 = vmatpush.bf16.msra.mxu0 0
        %1040 = vmatpush.bf16.msra.mxu0 0
        %1041 = vmatpush.bf16.msra.mxu0 %v1032
        %1042 = vmatmul.bf16.gmra.mxu0 %v1029
        %v1043 = vpop.f32.mrf.mxu0
        %v1044 = vadd.f32 0.0, %v1043
        %v1045 = vpop.f32.mrf.mxu0
        %1046 = vdwg.mxu0
        %v1047 = vld [vmem:[#allocation2] sm:$0xff]
        %v1048 = vld [vmem:[#allocation2 + $0x8] sm:$0xff]
        %v1049 = vld [vmem:[#allocation2 + $0x10] sm:$0xff]
        %v1050 = vld [vmem:[#allocation2 + $0x18] sm:$0xff]
        %v1051 = vsel %vm969, %v987, -inf
        %1052 = vmax.xlane.f32.xlu0 %v1051
        %v1053 = vpop.xlane.xlu0 %1052
        %v1054 = vsel %vm969, %v1006, -inf
        %1055 = vmax.xlane.f32.xlu0 %v1054
        %v1056 = vpop.xlane.xlu0 %1055
        %v1057 = vsel %vm969, %v1025, -inf
        %1058 = vmax.xlane.f32.xlu0 %v1057
        %v1059 = vpop.xlane.xlu0 %1058
        %v1060 = vsel %vm969, %v1044, -inf
        %1061 = vmax.xlane.f32.xlu0 %v1060
        %v1062 = vpop.xlane.xlu0 %1061
        %v1063 = vmax.f32 %v1047, %v1053
        %v1064 = vmax.f32 %v1048, %v1056
        %v1065 = vmax.f32 %v1049, %v1059
        %v1066 = vmax.f32 %v1050, %v1062
        %v1067 = vsub.f32 %v1047, %v1063
        %v1068 = vsub.f32 %v1048, %v1064
        %v1069 = vsub.f32 %v1049, %v1065
        %v1070 = vsub.f32 %v1050, %v1066
        %v1071 = vmul.f32 %v1067, 1.442695
        %v1072 = vpow.pop %v1071
        %v1073 = vmul.f32 %v1068, 1.442695
        %v1074 = vpow.pop %v1073
        %v1075 = vmul.f32 %v1069, 1.442695
        %v1076 = vpow.pop %v1075
        %v1077 = vmul.f32 %v1070, 1.442695
        %v1078 = vpow.pop %v1077
        %1080 = vset.pattern.permute.xlu0 0
        %1081 = vperm.xlu0 %1080, %v1063
        %v1082 = vpop.permute.xlu0 %1081
        %1085 = vset.pattern.permute.xlu0 0
        %1086 = vperm.xlu0 %1085, %v1064
        %v1087 = vpop.permute.xlu0 %1086
        %1090 = vset.pattern.permute.xlu0 0
        %1091 = vperm.xlu0 %1090, %v1065
        %v1092 = vpop.permute.xlu0 %1091
        %1095 = vset.pattern.permute.xlu0 0
        %1096 = vperm.xlu0 %1095, %v1066
        %v1097 = vpop.permute.xlu0 %1096
        %v1099 = vsub.f32 %v987, %v1082
        %v1100 = vsub.f32 %v1006, %v1087
        %v1101 = vsub.f32 %v1025, %v1092
        %v1102 = vsub.f32 %v1044, %v1097
        %v1103 = vmul.f32 %v1099, 1.442695
        %v1104 = vpow.pop %v1103
        %v1105 = vmul.f32 %v1100, 1.442695
        %v1106 = vpow.pop %v1105
        %v1107 = vmul.f32 %v1101, 1.442695
        %v1108 = vpow.pop %v1107
        %v1109 = vmul.f32 %v1102, 1.442695
        %v1110 = vpow.pop %v1109
        %v1111 = vld [vmem:[#allocation3] sm:$0xff]
        %v1112 = vld [vmem:[#allocation3 + $0x8] sm:$0xff]
        %v1113 = vld [vmem:[#allocation3 + $0x10] sm:$0xff]
        %v1114 = vld [vmem:[#allocation3 + $0x18] sm:$0xff]
        %v1115 = vmul.f32 %v1072, %v1111
        %v1116 = vmul.f32 %v1074, %v1112
        %v1117 = vmul.f32 %v1076, %v1113
        %v1118 = vmul.f32 %v1078, %v1114
        %v1119 = vsel %vm969, %v1104, 0.0
        %1120 = vadd.xlane.f32.xlu0 %v1119
        %v1121 = vpop.xlane.xlu0 %1120
        %v1122 = vsel %vm969, %v1106, 0.0
        %1123 = vadd.xlane.f32.xlu0 %v1122
        %v1124 = vpop.xlane.xlu0 %1123
        %v1125 = vsel %vm969, %v1108, 0.0
        %1126 = vadd.xlane.f32.xlu0 %v1125
        %v1127 = vpop.xlane.xlu0 %1126
        %v1128 = vsel %vm969, %v1110, 0.0
        %1129 = vadd.xlane.f32.xlu0 %v1128
        %v1130 = vpop.xlane.xlu0 %1129
        %v1131 = vadd.f32 %v1115, %v1121
        %v1132 = vadd.f32 %v1116, %v1124
        %v1133 = vadd.f32 %v1117, %v1127
        %v1134 = vadd.f32 %v1118, %v1130
        %vm1135 = vcmask 7168
        %1136 = vst.msk [vmem:[#allocation3] sm:$0xff] %vm1135, %v1131
        %1137 = vst.msk [vmem:[#allocation3 + $0x8] sm:$0xff] %vm1135, %v1132
        %1138 = vst.msk [vmem:[#allocation3 + $0x10] sm:$0xff] %vm1135, %v1133
        %1139 = vst.msk [vmem:[#allocation3 + $0x18] sm:$0xff] %vm1135, %v1134
        %v1140 = vld [vmem:[#allocation4] sm:$0xff]
        %v1141 = vld [vmem:[#allocation4 + $0x8] sm:$0xff]
        %v1142 = vld [vmem:[#allocation4 + $0x10] sm:$0xff]
        %v1143 = vld [vmem:[#allocation4 + $0x18] sm:$0xff]
        %1145 = vset.pattern.permute.xlu0 0
        %1146 = vperm.xlu0 %1145, %v1072
        %v1147 = vpop.permute.xlu0 %1146
        %1150 = vset.pattern.permute.xlu0 0
        %1151 = vperm.xlu0 %1150, %v1074
        %v1152 = vpop.permute.xlu0 %1151
        %1155 = vset.pattern.permute.xlu0 0
        %1156 = vperm.xlu0 %1155, %v1076
        %v1157 = vpop.permute.xlu0 %1156
        %1160 = vset.pattern.permute.xlu0 0
        %1161 = vperm.xlu0 %1160, %v1078
        %v1162 = vpop.permute.xlu0 %1161
        %v1164 = vmul.f32 %v1147, %v1140
        %v1165 = vmul.f32 %v1152, %v1141
        %v1166 = vmul.f32 %v1157, %v1142
        %v1167 = vmul.f32 %v1162, %v1143
        %v1168 = vpack.c.bf16 %v1104, %v1104
        %v1169 = vpack.c.bf16 %v1106, %v1106
        %v1170 = vpack.c.bf16 %v1108, %v1108
        %v1171 = vpack.c.bf16 %v1110, %v1110
        %v1172 = vsel %vm337, %v495, %v488
        %v1174 = vunpack.c.l.s4 1983009808
        %v1175 = vunpack.c.0.s8 %v1174
        %v1176 = vperm.slane %v1172, %v1175
        %v1177 = vrot.slane %v496, 4
        %v1178 = vsel %vm337, %v1177, %v494
        %v1180 = vunpack.c.l.s4 1983009808
        %v1181 = vunpack.c.0.s8 %v1180
        %v1182 = vperm.slane %v1178, %v1181
        %v1183 = vrot.slane %v1182, 4
        %v1184 = vsel %vm337, %v1183, %v1176
        %v1186 = vunpack.c.l.s4 1934713408
        %v1187 = vunpack.c.0.s8 %v1186
        %v1188 = vperm.slane %v1184, %v1187
        %v1189 = vrot.slane %v1188, 4
        %v1190 = vsel %vm337, 0, %v1189
        %v1191 = vsel %vm337, %v521, %v514
        %v1193 = vunpack.c.l.s4 1983009808
        %v1194 = vunpack.c.0.s8 %v1193
        %v1195 = vperm.slane %v1191, %v1194
        %v1196 = vrot.slane %v522, 4
        %v1197 = vsel %vm337, %v1196, %v520
        %v1199 = vunpack.c.l.s4 1983009808
        %v1200 = vunpack.c.0.s8 %v1199
        %v1201 = vperm.slane %v1197, %v1200
        %v1202 = vrot.slane %v1201, 4
        %v1203 = vsel %vm337, %v1202, %v1195
        %v1205 = vunpack.c.l.s4 1934713408
        %v1206 = vunpack.c.0.s8 %v1205
        %v1207 = vperm.slane %v1203, %v1206
        %v1208 = vrot.slane %v1207, 4
        %v1209 = vsel %vm337, 0, %v1208
        %v1212 = vpack.i.b16 %v1207, %v1188
        %v1213 = vshrl.u32 %v1188, 16
        %v1214 = vshrl.u32 %v1207, 16
        %v1215 = vpack.i.b16 %v1214, %v1213
        %v1218 = vpack.i.b16 %v1209, %v1190
        %v1219 = vshrl.u32 %v1190, 16
        %v1220 = vshrl.u32 %v1209, 16
        %v1221 = vpack.i.b16 %v1220, %v1219
        %v1223 = vsel %vm969, %v1168, 0
        %v1226 = vsel %vm973, %v1212, 0
        %1228 = vmatpush.bf16.msra.mxu0 0
        %1229 = vmatpush.bf16.msra.mxu0 0
        %1230 = vmatpush.bf16.msra.mxu0 0
        %1231 = vmatpush.bf16.msra.mxu0 0
        %1232 = vmatpush.bf16.msra.mxu0 0
        %1233 = vmatpush.bf16.msra.mxu0 0
        %1234 = vmatpush.bf16.msra.mxu0 0
        %1235 = vmatpush.bf16.msra.mxu0 %v1226
        %1236 = vmatmul.bf16.gmra.mxu0 %v1223
        %v1237 = vpop.f32.mrf.mxu0
        %v1238 = vadd.f32 0.0, %v1237
        %v1239 = vpop.f32.mrf.mxu0
        %1240 = vdwg.mxu0
        %v1242 = vsel %vm969, %v1169, 0
        %v1245 = vsel %vm973, %v1215, 0
        %1247 = vmatpush.bf16.msra.mxu0 0
        %1248 = vmatpush.bf16.msra.mxu0 0
        %1249 = vmatpush.bf16.msra.mxu0 0
        %1250 = vmatpush.bf16.msra.mxu0 0
        %1251 = vmatpush.bf16.msra.mxu0 0
        %1252 = vmatpush.bf16.msra.mxu0 0
        %1253 = vmatpush.bf16.msra.mxu0 0
        %1254 = vmatpush.bf16.msra.mxu0 %v1245
        %1255 = vmatmul.bf16.gmra.mxu0 %v1242
        %v1256 = vpop.f32.mrf.mxu0
        %v1257 = vadd.f32 0.0, %v1256
        %v1258 = vpop.f32.mrf.mxu0
        %1259 = vdwg.mxu0
        %v1261 = vsel %vm969, %v1170, 0
        %v1264 = vsel %vm973, %v1218, 0
        %1266 = vmatpush.bf16.msra.mxu0 0
        %1267 = vmatpush.bf16.msra.mxu0 0
        %1268 = vmatpush.bf16.msra.mxu0 0
        %1269 = vmatpush.bf16.msra.mxu0 0
        %1270 = vmatpush.bf16.msra.mxu0 0
        %1271 = vmatpush.bf16.msra.mxu0 0
        %1272 = vmatpush.bf16.msra.mxu0 0
        %1273 = vmatpush.bf16.msra.mxu0 %v1264
        %1274 = vmatmul.bf16.gmra.mxu0 %v1261
        %v1275 = vpop.f32.mrf.mxu0
        %v1276 = vadd.f32 0.0, %v1275
        %v1277 = vpop.f32.mrf.mxu0
        %1278 = vdwg.mxu0
        %v1280 = vsel %vm969, %v1171, 0
        %v1283 = vsel %vm973, %v1221, 0
        %1285 = vmatpush.bf16.msra.mxu0 0
        %1286 = vmatpush.bf16.msra.mxu0 0
        %1287 = vmatpush.bf16.msra.mxu0 0
        %1288 = vmatpush.bf16.msra.mxu0 0
        %1289 = vmatpush.bf16.msra.mxu0 0
        %1290 = vmatpush.bf16.msra.mxu0 0
        %1291 = vmatpush.bf16.msra.mxu0 0
        %1292 = vmatpush.bf16.msra.mxu0 %v1283
        %1293 = vmatmul.bf16.gmra.mxu0 %v1280
        %v1294 = vpop.f32.mrf.mxu0
        %v1295 = vadd.f32 0.0, %v1294
        %v1296 = vpop.f32.mrf.mxu0
        %1297 = vdwg.mxu0
        %v1298 = vadd.f32 %v1164, %v1238
        %v1299 = vadd.f32 %v1165, %v1257
        %v1300 = vadd.f32 %v1166, %v1276
        %v1301 = vadd.f32 %v1167, %v1295
        %1302 = vst.msk [vmem:[#allocation4] sm:$0xff] %vm969, %v1298
        %1303 = vst.msk [vmem:[#allocation4 + $0x8] sm:$0xff] %vm969, %v1299
        %1304 = vst.msk [vmem:[#allocation4 + $0x10] sm:$0xff] %vm969, %v1300
        %1305 = vst.msk [vmem:[#allocation4 + $0x18] sm:$0xff] %vm969, %v1301
        %1306 = vst.msk [vmem:[#allocation2] sm:$0xff] %vm1135, %v1063
        %1307 = vst.msk [vmem:[#allocation2 + $0x8] sm:$0xff] %vm1135, %v1064
        %1308 = vst.msk [vmem:[#allocation2 + $0x10] sm:$0xff] %vm1135, %v1065
        %1309 = vst.msk [vmem:[#allocation2 + $0x18] sm:$0xff] %vm1135, %v1066
        // Predicated region
        $region41: #{self_attention_forward.3} parent=35 // pred_check
          %p1310 = pneg %p288
        $region42: #{self_attention_forward.3} parent=35 // pred_check_branch
          %1312 = sbr.rel (%p1310) target = $region44
        $region43: #{self_attention_forward.3} parent=35 // pred_region
          %v1313 = vld [vmem:[#allocation4] sm:$0xff]
          %v1314 = vld [vmem:[#allocation4 + $0x8] sm:$0xff]
          %v1315 = vld [vmem:[#allocation4 + $0x10] sm:$0xff]
          %v1316 = vld [vmem:[#allocation4 + $0x18] sm:$0xff]
          %v1317 = vld [vmem:[#allocation3] sm:$0xff]
          %v1318 = vld [vmem:[#allocation3 + $0x8] sm:$0xff]
          %v1319 = vld [vmem:[#allocation3 + $0x10] sm:$0xff]
          %v1320 = vld [vmem:[#allocation3 + $0x18] sm:$0xff]
          %1322 = vset.pattern.permute.xlu0 0
          %1323 = vperm.xlu0 %1322, %v1317
          %v1324 = vpop.permute.xlu0 %1323
          %1327 = vset.pattern.permute.xlu0 0
          %1328 = vperm.xlu0 %1327, %v1318
          %v1329 = vpop.permute.xlu0 %1328
          %1332 = vset.pattern.permute.xlu0 0
          %1333 = vperm.xlu0 %1332, %v1319
          %v1334 = vpop.permute.xlu0 %1333
          %1337 = vset.pattern.permute.xlu0 0
          %1338 = vperm.xlu0 %1337, %v1320
          %v1339 = vpop.permute.xlu0 %1338
          %v1341 = vrcp.pop %v1324
          %v1342 = vmul.f32 %v1324, %v1341
          %v1343 = vsub.f32 1.0, %v1342
          %v1344 = vmul.f32 %v1341, %v1343
          %v1345 = vadd.f32 %v1341, %v1344
          %vm1346 = vweird.f32 %v1324
          %vm1347 = vweird.f32 %v1341
          %vm1348 = vmor %vm1346, %vm1347
          %v1349 = vsel %vm1348, %v1341, %v1345
          %v1350 = vand.u32 2147483647, %v1324
          %vm1351 = vcmp.eq.f32.partialorder %v1350, 8.507059e+37
          %v1352 = vand.u32 %v1324, 2147483648
          %v1353 = vor.u32 1.1754944e-38, %v1352
          %v1354 = vsel %vm1351, %v1353, %v1349
          %v1355 = vmul.f32 %v1313, %v1354
          %v1356 = vrcp.pop %v1329
          %v1357 = vmul.f32 %v1329, %v1356
          %v1358 = vsub.f32 1.0, %v1357
          %v1359 = vmul.f32 %v1356, %v1358
          %v1360 = vadd.f32 %v1356, %v1359
          %vm1361 = vweird.f32 %v1329
          %vm1362 = vweird.f32 %v1356
          %vm1363 = vmor %vm1361, %vm1362
          %v1364 = vsel %vm1363, %v1356, %v1360
          %v1365 = vand.u32 2147483647, %v1329
          %vm1366 = vcmp.eq.f32.partialorder %v1365, 8.507059e+37
          %v1367 = vand.u32 %v1329, 2147483648
          %v1368 = vor.u32 1.1754944e-38, %v1367
          %v1369 = vsel %vm1366, %v1368, %v1364
          %v1370 = vmul.f32 %v1314, %v1369
          %v1371 = vrcp.pop %v1334
          %v1372 = vmul.f32 %v1334, %v1371
          %v1373 = vsub.f32 1.0, %v1372
          %v1374 = vmul.f32 %v1371, %v1373
          %v1375 = vadd.f32 %v1371, %v1374
          %vm1376 = vweird.f32 %v1334
          %vm1377 = vweird.f32 %v1371
          %vm1378 = vmor %vm1376, %vm1377
          %v1379 = vsel %vm1378, %v1371, %v1375
          %v1380 = vand.u32 2147483647, %v1334
          %vm1381 = vcmp.eq.f32.partialorder %v1380, 8.507059e+37
          %v1382 = vand.u32 %v1334, 2147483648
          %v1383 = vor.u32 1.1754944e-38, %v1382
          %v1384 = vsel %vm1381, %v1383, %v1379
          %v1385 = vmul.f32 %v1315, %v1384
          %v1386 = vrcp.pop %v1339
          %v1387 = vmul.f32 %v1339, %v1386
          %v1388 = vsub.f32 1.0, %v1387
          %v1389 = vmul.f32 %v1386, %v1388
          %v1390 = vadd.f32 %v1386, %v1389
          %vm1391 = vweird.f32 %v1339
          %vm1392 = vweird.f32 %v1386
          %vm1393 = vmor %vm1391, %vm1392
          %v1394 = vsel %vm1393, %v1386, %v1390
          %v1395 = vand.u32 2147483647, %v1339
          %vm1396 = vcmp.eq.f32.partialorder %v1395, 8.507059e+37
          %v1397 = vand.u32 %v1339, 2147483648
          %v1398 = vor.u32 1.1754944e-38, %v1397
          %v1399 = vsel %vm1396, %v1398, %v1394
          %v1400 = vmul.f32 %v1316, %v1399
          %v1401 = vrot.slane %v1385, 4
          %vm1402 = vcmask 1047556
          %v1403 = vsel %vm1402, %v1401, %v1355
          %v1404 = vrot.slane %v1355, 4
          %v1405 = vsel %vm1402, %v1385, %v1404
          %v1407 = vunpack.c.l.s4 1983009808
          %v1408 = vunpack.c.0.s8 %v1407
          %v1409 = vperm.slane %v1403, %v1408
          %v1411 = vunpack.c.l.s4 1983009808
          %v1412 = vunpack.c.0.s8 %v1411
          %v1413 = vperm.slane %v1405, %v1412
          %v1414 = vrot.slane %v1400, 4
          %v1415 = vsel %vm1402, %v1414, %v1370
          %v1416 = vrot.slane %v1370, 4
          %v1417 = vsel %vm1402, %v1400, %v1416
          %v1419 = vunpack.c.l.s4 1983009808
          %v1420 = vunpack.c.0.s8 %v1419
          %v1421 = vperm.slane %v1415, %v1420
          %v1423 = vunpack.c.l.s4 1983009808
          %v1424 = vunpack.c.0.s8 %v1423
          %v1425 = vperm.slane %v1417, %v1424
          %v1426 = vrot.slane %v1421, 4
          %v1427 = vsel %vm1402, %v1426, %v1409
          %v1428 = vrot.slane %v1409, 4
          %v1429 = vsel %vm1402, %v1421, %v1428
          %v1431 = vunpack.c.l.s4 1934713408
          %v1432 = vunpack.c.0.s8 %v1431
          %v1433 = vperm.slane %v1427, %v1432
          %v1435 = vunpack.c.l.s4 1934713408
          %v1436 = vunpack.c.0.s8 %v1435
          %v1437 = vperm.slane %v1429, %v1436
          %v1438 = vrot.slane %v1425, 4
          %v1439 = vsel %vm1402, %v1438, %v1413
          %v1440 = vrot.slane %v1413, 4
          %v1441 = vsel %vm1402, %v1425, %v1440
          %v1443 = vunpack.c.l.s4 1934713408
          %v1444 = vunpack.c.0.s8 %v1443
          %v1445 = vperm.slane %v1439, %v1444
          %v1447 = vunpack.c.l.s4 1934713408
          %v1448 = vunpack.c.0.s8 %v1447
          %v1449 = vperm.slane %v1441, %v1448
          %v1450 = vrot.slane %v1433, 4
          %v1451 = vsel %vm1402, 0.0, %v1450
          %v1452 = vrot.slane %v1437, 4
          %v1453 = vsel %vm1402, 0.0, %v1452
          %v1454 = vrot.slane %v1445, 4
          %v1455 = vsel %vm1402, 0.0, %v1454
          %v1456 = vrot.slane %v1449, 4
          %v1457 = vsel %vm1402, 0.0, %v1456
          %v1458 = vsel %vm1402, %v1452, %v1433
          %v1460 = vunpack.c.l.s4 1983009808
          %v1461 = vunpack.c.0.s8 %v1460
          %v1462 = vperm.slane %v1458, %v1461
          %v1463 = vrot.slane %v1453, 4
          %v1464 = vsel %vm1402, %v1463, %v1451
          %v1466 = vunpack.c.l.s4 1983009808
          %v1467 = vunpack.c.0.s8 %v1466
          %v1468 = vperm.slane %v1464, %v1467
          %v1469 = vsel %vm1402, %v1456, %v1445
          %v1471 = vunpack.c.l.s4 1983009808
          %v1472 = vunpack.c.0.s8 %v1471
          %v1473 = vperm.slane %v1469, %v1472
          %v1474 = vrot.slane %v1457, 4
          %v1475 = vsel %vm1402, %v1474, %v1455
          %v1477 = vunpack.c.l.s4 1983009808
          %v1478 = vunpack.c.0.s8 %v1477
          %v1479 = vperm.slane %v1475, %v1478
          %v1480 = vrot.slane %v1468, 4
          %v1481 = vsel %vm1402, %v1480, %v1462
          %v1482 = vrot.slane %v1462, 4
          %v1483 = vsel %vm1402, %v1468, %v1482
          %v1485 = vunpack.c.l.s4 1934713408
          %v1486 = vunpack.c.0.s8 %v1485
          %v1487 = vperm.slane %v1481, %v1486
          %v1489 = vunpack.c.l.s4 1934713408
          %v1490 = vunpack.c.0.s8 %v1489
          %v1491 = vperm.slane %v1483, %v1490
          %v1492 = vrot.slane %v1479, 4
          %v1493 = vsel %vm1402, %v1492, %v1473
          %v1494 = vrot.slane %v1473, 4
          %v1495 = vsel %vm1402, %v1479, %v1494
          %v1497 = vunpack.c.l.s4 1934713408
          %v1498 = vunpack.c.0.s8 %v1497
          %v1499 = vperm.slane %v1493, %v1498
          %v1501 = vunpack.c.l.s4 1934713408
          %v1502 = vunpack.c.0.s8 %v1501
          %v1503 = vperm.slane %v1495, %v1502
          %v1504 = vrot.slane %v1499, 4
          %v1505 = vsel %vm1402, %v1504, %v1487
          %v1506 = vrot.slane %v1487, 4
          %v1507 = vsel %vm1402, %v1499, %v1506
          %v1508 = vrot.slane %v1503, 4
          %v1509 = vsel %vm1402, %v1508, %v1491
          %v1510 = vrot.slane %v1491, 4
          %v1511 = vsel %vm1402, %v1503, %v1510
          %1513 = vrot.lane.b32.xlu0 %v1507, 8
          %v1514 = vpop.permute.xlu0 %1513
          %1517 = vrot.lane.b32.xlu0 %v1509, 16
          %v1518 = vpop.permute.xlu0 %1517
          %1521 = vrot.lane.b32.xlu0 %v1511, 24
          %v1522 = vpop.permute.xlu0 %1521
          %v1524 = vsel %vm969, %v1505, %v1514
          %vm1525 = vcmask 130048
          %v1526 = vsel %vm1525, %v1524, %v1518
          %vm1527 = vcmask 195584
          %v1528 = vsel %vm1527, %v1526, %v1522
          %v1529 = vpack.c.bf16 %v1528, %v1528
          %v1530 = vld [vmem:[%s3] sm:$0xf]
          %v1531 = vld [vmem:[%s3 + $0x4] sm:$0xf]
          %v1532 = vld [vmem:[%s3 + $0x8] sm:$0xf]
          %v1533 = vld [vmem:[%s3 + $0xc] sm:$0xf]
          %v1538 = vunpack.c.l.b16 %v1530
          %v1539 = vunpack.c.l.b16 %v1531
          %v1540 = vunpack.c.l.b16 %v1532
          %v1541 = vunpack.c.l.b16 %v1533
          %v1542 = vpack.c.b16 %v1539, %v1538
          %v1543 = vpack.c.b16 %v1541, %v1540
          %vm1546 = vcmask 261120
          %v1548 = vsel %vm1546, %v1529, 0
          %1550 = vmatpush.bf16.msra.mxu0 0
          %1551 = vmatpush.bf16.msra.mxu0 0
          %1552 = vmatpush.bf16.msra.mxu0 0
          %1553 = vmatpush.bf16.msra.mxu0 0
          %1554 = vmatpush.bf16.msra.mxu0 0
          %1555 = vmatpush.bf16.msra.mxu0 0
          %1556 = vmatpush.bf16.msra.mxu0 %v1543
          %1557 = vmatpush.bf16.msra.mxu0 %v1542
          %1558 = vmatmul.bf16.gmra.mxu0 %v1548
          %v1559 = vpop.f32.mrf.mxu0
          %v1560 = vadd.f32 0.0, %v1559
          %v1561 = vpop.f32.mrf.mxu0
          %1562 = vdwg.mxu0
          %v1563 = vpack.c.bf16 %v1560, %v1560
          %vm1564 = vcmask 257024
          %1565 = vst.msk [vmem:[%s263] sm:$0xf] %vm1564, %v1563
        $region44: #{self_attention_forward.3} parent=35 // pred_fallthru
          _
        %s1566 = sand.u32 %s152, 1
        %s1567 = scalar_lea.sflag [#allocation6], %s1566
        %s1568 = sand.u32 %s152, 1
        %s1569 = smul.addr %s1568, 4
        %s1570 = scalar_lea.vmem [#allocation5], %s1569
        // Predicated region
        $region45: #{self_attention_forward.3} parent=35 // pred_check
          %p1571 = pneg %p162
        $region46: #{self_attention_forward.3} parent=35 // pred_check_branch
          %1573 = sbr.rel (%p1571) target = $region48
        $region47: #{self_attention_forward.3} parent=35 // pred_region
          %1575 = vsyncadd %s1567, 0
          %s1576 = sadd.s32 %s24, %s23
          %s1577 = smul.addr %s1576, 4
          %s1578 = scalar_lea.hbm %s4, %s1577
          %s1580 = sshll.u32 %s1570, 4
          %s1581 = int_to_ptr.vmem [resolvable:$true] %s1580
          %s1582 = sshll.u32 %s1578, 4
          %s1583 = int_to_ptr.hbm [resolvable:$true] %s1582
          %1585 = dma.vmem_to_hbm [thread:$0]  %s1581, 64, %s1583, %s1567
        $region48: #{self_attention_forward.3} parent=35 // pred_fallthru
          _
      $region36: #{self_attention_forward.3} parent=5 // pred_fallthru
        _
      %p1586 = scmp.le.s32.totalorder 2, %s13
      // Predicated region
      $region49: #{self_attention_forward.3} parent=5 // pred_check
        %p1587 = pneg %p1586
      $region50: #{self_attention_forward.3} parent=5 // pred_check_branch
        %1589 = sbr.rel (%p1587) target = $region52
      $region51: #{self_attention_forward.3} parent=5 // pred_region
        %s1590 = ssub.s32 %s13, 2
        // Predicated region
        $region53: #{self_attention_forward.3} parent=51 // pred_check
          %p1591 = pneg %p168
        $region54: #{self_attention_forward.3} parent=51 // pred_check_branch
          %1593 = sbr.rel (%p1591) target = $region56
        $region55: #{self_attention_forward.3} parent=51 // pred_region
          %s1594 = sand.u32 %s153, 1
          %s1595 = scalar_lea.sflag [#allocation6], %s1594
          %s1596 = sand.u32 %s153, 1
          %s1597 = smul.addr %s1596, 4
          %s1598 = scalar_lea.vmem [#allocation5], %s1597
          %1600 = dma.done %s1595, 64
        $region56: #{self_attention_forward.3} parent=51 // pred_fallthru
          _
      $region52: #{self_attention_forward.3} parent=5 // pred_fallthru
        _
    $region6: #{self_attention_forward.3} parent=1 // loop_footer
      %s17 = sadd.s32 1, %s13
    $region7: #{self_attention_forward.3} parent=1 // loop_footer_branch
      %12 = sbr.rel target = $region3
    $region8: #{self_attention_forward.3} parent=1 // loop_exit
      _
    %1601 = vsyncpa [#allocation6], 1
    %s1602 = scalar_lea.sflag [#allocation6], 1
    %1603 = vsyncpa %s1602, 1

</llo_original>
